<compile_context>
chip_gen: v6e
topology: v6e:2x2x1
jax: 0.10.0
libtpu: 0.0.40
codegen_flags: <defaults>
</compile_context>

<pallas_src>
import functools

import jax
import jax.numpy as jnp
from jax.experimental import pallas as pl
from jax.experimental.pallas import tpu as pltpu


# ----------------------------------------------------------------------------
# Small helpers
# ----------------------------------------------------------------------------
def _round_up(x, m):
    return ((x + m - 1) // m) * m


def _pad_to(a, shape):
    """Zero-pad a 2D array up to `shape` (exact math: padded lanes stay 0)."""
    pads = [(0, s - d) for d, s in zip(a.shape, shape)]
    return jnp.pad(a, pads)


def _pick_tb(T):
    """Timesteps per grid step: prefer a multiple of 8 that divides T."""
    for tb in (16, 8):
        if T % tb == 0:
            return tb
    return T  # fall back: whole sequence in one grid step (block == full dim)


# ----------------------------------------------------------------------------
# Pallas kernels
# ----------------------------------------------------------------------------
def _proj_kernel(x_ref, w_ref, b_ref, a_ref):
    """Hoisted input projection: A = X @ Uw + (Ub + Wb), tiled over rows."""
    a_ref[...] = (
        jnp.dot(x_ref[...], w_ref[...], preferred_element_type=jnp.float32)
        + b_ref[...]
    ).astype(a_ref.dtype)


def _rnn_kernel(a_ref, ww_ref, h_out_ref, h_carry):
    """Recurrence only (intermediate stacked layers).

    a_ref    : (B, TB, Hp)  precomputed x@Uw + bias for this timestep block
    ww_ref   : (Hp, Hp)     hidden->hidden weight (pre-transposed, zero padded)
    h_out_ref: (B, TB, Hp)  hidden states (batch-first), feeds the next layer
    h_carry  : (B, Hp)      VMEM carry of h across the sequential grid
    """
    @pl.when(pl.program_id(0) == 0)
    def _():
        h_carry[...] = jnp.zeros_like(h_carry)

    a = a_ref[...]
    ww = ww_ref[...]
    h = h_carry[...]
    tb = a.shape[1]
    for t in range(tb):  # static unrolled loop over the timestep block
        h = jnp.tanh(a[:, t, :] + jnp.dot(h, ww, preferred_element_type=jnp.float32))
        h_out_ref[:, t, :] = h.astype(h_out_ref.dtype)
    h_carry[...] = h


def _rnn_fc_kernel(a_ref, ww_ref, w1_ref, b1_ref, w2_ref, b2_ref, w3_ref, b3_ref,
                   out_ref, h_carry, h_blk):
    """Last-layer recurrence with fused fc1 -> drop1(id) -> fc2 -> drop2(id) -> fc3.

    out_ref : (B, TB, Op)   final output block (lane-dense, batch-first)
    h_blk   : (B, TB, Hp)   VMEM staging of this block's hidden states
    """
    @pl.when(pl.program_id(0) == 0)
    def _():
        h_carry[...] = jnp.zeros_like(h_carry)

    a = a_ref[...]                       # (B, TB, Hp)
    ww = ww_ref[...]                     # (Hp, Hp)
    h = h_carry[...]                     # (B, Hp)
    B, tb, hp = a.shape
    for t in range(tb):                  # static unrolled loop
        h = jnp.tanh(a[:, t, :] + jnp.dot(h, ww, preferred_element_type=jnp.float32))
        h_blk[:, t, :] = h
    h_carry[...] = h

    # Fused FC head on the whole (B*TB, Hp) block (dropouts: identity, eval mode).
    hb = h_blk[...].reshape(B * tb, hp)
    y = jnp.dot(hb, w1_ref[...], preferred_element_type=jnp.float32) + b1_ref[...]
    y = jnp.dot(y, w2_ref[...], preferred_element_type=jnp.float32) + b2_ref[...]
    y = jnp.dot(y, w3_ref[...], preferred_element_type=jnp.float32) + b3_ref[...]
    out_ref[...] = y.reshape(out_ref.shape).astype(out_ref.dtype)


# ----------------------------------------------------------------------------
# pallas_call wrappers
# ----------------------------------------------------------------------------
def _run_projection(x2d, w, b):
    """x2d: (N, K) -> (N, Hp) = x2d @ w + b, tiled over N."""
    N, K = x2d.shape
    Hp = w.shape[1]
    TN = 512 if (N > 512 and N % 512 == 0) else N
    return pl.pallas_call(
        _proj_kernel,
        out_shape=jax.ShapeDtypeStruct((N, Hp), jnp.float32),
        grid_spec=pltpu.PrefetchScalarGridSpec(
            num_scalar_prefetch=0,
            grid=(N // TN,),
            in_specs=[
                pl.BlockSpec((TN, K), lambda i: (i, 0)),
                pl.BlockSpec((K, Hp), lambda i: (0, 0)),
                pl.BlockSpec((1, Hp), lambda i: (0, 0)),
            ],
            out_specs=pl.BlockSpec((TN, Hp), lambda i: (i, 0)),
        ),
        compiler_params=pltpu.CompilerParams(dimension_semantics=("parallel",)),
    )(x2d, w, b)


def _run_rnn_layer(a_bt, ww, tb):
    """Intermediate layer recurrence: (B, T, Hp) A -> (B, T, Hp) hidden states."""
    B, T, Hp = a_bt.shape
    return pl.pallas_call(
        _rnn_kernel,
        out_shape=jax.ShapeDtypeStruct((B, T, Hp), jnp.float32),
        grid_spec=pltpu.PrefetchScalarGridSpec(
            num_scalar_prefetch=0,
            grid=(T // tb,),
            in_specs=[
                pl.BlockSpec((B, tb, Hp), lambda i: (0, i, 0)),
                pl.BlockSpec((Hp, Hp), lambda i: (0, 0)),
            ],
            out_specs=pl.BlockSpec((B, tb, Hp), lambda i: (0, i, 0)),
            scratch_shapes=[pltpu.VMEM((B, Hp), jnp.float32)],
        ),
        compiler_params=pltpu.CompilerParams(dimension_semantics=("arbitrary",)),
    )(a_bt, ww)


def _run_rnn_fc(a_bt, ww, w1, b1, w2, b2, w3, b3, tb):
    """Last layer recurrence + fused FC head: (B, T, Hp) A -> (B, T, Op) out."""
    B, T, Hp = a_bt.shape
    Op = w3.shape[1]
    return pl.pallas_call(
        _rnn_fc_kernel,
        out_shape=jax.ShapeDtypeStruct((B, T, Op), jnp.float32),
        grid_spec=pltpu.PrefetchScalarGridSpec(
            num_scalar_prefetch=0,
            grid=(T // tb,),
            in_specs=[
                pl.BlockSpec((B, tb, Hp), lambda i: (0, i, 0)),
                pl.BlockSpec((Hp, Hp), lambda i: (0, 0)),
                pl.BlockSpec((Hp, Hp), lambda i: (0, 0)),
                pl.BlockSpec((1, Hp), lambda i: (0, 0)),
                pl.BlockSpec((Hp, Hp), lambda i: (0, 0)),
                pl.BlockSpec((1, Hp), lambda i: (0, 0)),
                pl.BlockSpec((Hp, Op), lambda i: (0, 0)),
                pl.BlockSpec((1, Op), lambda i: (0, 0)),
            ],
            out_specs=pl.BlockSpec((B, tb, Op), lambda i: (0, i, 0)),
            scratch_shapes=[
                pltpu.VMEM((B, Hp), jnp.float32),       # h carry
                pltpu.VMEM((B, tb, Hp), jnp.float32),   # hidden-state block staging
            ],
        ),
        compiler_params=pltpu.CompilerParams(dimension_semantics=("arbitrary",)),
    )(a_bt, ww, w1, b1, w2, b2, w3, b3)


# ----------------------------------------------------------------------------
# Full model forward (batch-first in, batch-first out — matches nn.Module)
# ----------------------------------------------------------------------------
@jax.jit
def rnn_model_forward(x, params):
    """x: (batch, seq, input_size) -> (batch, seq, output_size)."""
    B, T, _ = x.shape
    H = params["rnn_layers"][0]["Uw"].shape[1]
    O = params["fc3_w"].shape[1]
    Hp = _round_up(H, 128)   # lane-dense hidden width
    Op = _round_up(O, 128)   # lane-dense output width
    tb = _pick_tb(T)

    # Pad FC head weights once (zero pads are exact; padded lanes stay 0).
    w1 = _pad_to(params["fc1_w"], (Hp, Hp)); b1 = _pad_to(params["fc1_b"], (1, Hp))
    w2 = _pad_to(params["fc2_w"], (Hp, Hp)); b2 = _pad_to(params["fc2_b"], (1, Hp))
    w3 = _pad_to(params["fc3_w"], (Hp, Op)); b3 = _pad_to(params["fc3_b"], (1, Op))

    n_layers = len(params["rnn_layers"])
    h = x  # stays batch-first the whole way (no wrapper transposes)
    out = None
    for li, layer in enumerate(params["rnn_layers"]):
        in_f = h.shape[-1]
        uw = _pad_to(layer["Uw"], (in_f, Hp))
        bias = _pad_to(layer["Ub"] + layer["Wb"], (1, Hp))   # fold Ub + Wb
        ww = _pad_to(layer["Ww"], (Hp, Hp))

        # Hoisted input projection: one big (B*T, in_f) x (in_f, Hp) matmul.
        a = _run_projection(h.reshape(B * T, in_f), uw, bias).reshape(B, T, Hp)

        if li == n_layers - 1:
            out = _run_rnn_fc(a, ww, w1, b1, w2, b2, w3, b3, tb)   # (B, T, Op)
        else:
            h = _run_rnn_layer(a, ww, tb)                          # (B, T, Hp)

    return out[:, :, :O]


# ----------------------------------------------------------------------------
# Deterministic parameter init (nn.Linear-style; stored pre-transposed (in,out))
# ----------------------------------------------------------------------------
def init_params(key, input_size, hidden_size, output_size, num_layers=1):
    def linear(key, fan_in, fan_out):
        kw, kb = jax.random.split(key)
        bound = 1.0 / jnp.sqrt(fan_in)
        w = jax.random.uniform(kw, (fan_in, fan_out), jnp.float32, -bound, bound)
        b = jax.random.uniform(kb, (1, fan_out), jnp.float32, -bound, bound)
        return w, b

    keys = jax.random.split(key, 2 * num_layers + 3)
    rnn_layers = []
    for l in range(num_layers):
        in_sz = input_size if l == 0 else hidden_size
        uw, ub = linear(keys[2 * l], in_sz, hidden_size)
        ww, wb = linear(keys[2 * l + 1], hidden_size, hidden_size)
        rnn_layers.append({"Uw": uw, "Ub": ub, "Ww": ww, "Wb": wb})

    fc1_w, fc1_b = linear(keys[-3], hidden_size, hidden_size)
    fc2_w, fc2_b = linear(keys[-2], hidden_size, hidden_size)
    fc3_w, fc3_b = linear(keys[-1], hidden_size, output_size)
    return {
        "rnn_layers": rnn_layers,
        "fc1_w": fc1_w, "fc1_b": fc1_b,
        "fc2_w": fc2_w, "fc2_b": fc2_b,
        "fc3_w": fc3_w, "fc3_b": fc3_b,
    }


# ----------------------------------------------------------------------------
# Pure-JAX reference (mirrors the PyTorch forward, eval-mode dropout)
# ----------------------------------------------------------------------------
def reference_forward(x, params):
    B, T, _ = x.shape
    xt = jnp.transpose(x, (1, 0, 2))
    num_layers = len(params["rnn_layers"])
    H = params["rnn_layers"][0]["Uw"].shape[1]
    hiddens = [jnp.zeros((B, H), jnp.float32) for _ in range(num_layers)]
    outs = []
    for t in range(T):
        inp = xt[t]
        for l, layer in enumerate(params["rnn_layers"]):
            a = inp @ layer["Uw"] + layer["Ub"] + hiddens[l] @ layer["Ww"] + layer["Wb"]
            hiddens[l] = jnp.tanh(a)
            inp = hiddens[l]
        outs.append(hiddens[-1])
    out = jnp.stack(outs, axis=0)
    out = out @ params["fc1_w"] + params["fc1_b"]
    out = out @ params["fc2_w"] + params["fc2_b"]
    out = out @ params["fc3_w"] + params["fc3_b"]
    return jnp.transpose(out, (1, 0, 2))


if __name__ == "__main__":
    batch, seq, input_size, hidden_size, output_size = 2, 8, 4, 32, 8

    key = jax.random.PRNGKey(0)
    k_param, k_x = jax.random.split(key)
    params = init_params(k_param, input_size, hidden_size, output_size, num_layers=1)
    x = jax.random.normal(k_x, (batch, seq, input_size), jnp.float32)

    out = jax.block_until_ready(rnn_model_forward(x, params))

    ref = reference_forward(x, params)
    assert out.shape == (batch, seq, output_size), out.shape
    # f32 everywhere; padded-lane MXU accumulation may differ at ulp level only.
    assert jnp.allclose(out, ref, atol=1e-4, rtol=1e-4), float(jnp.max(jnp.abs(out - ref)))

    print("KERNEL_OK")
</pallas_src>

<mosaic_0001>
module attributes {stable_mosaic.version = 11 : i64} {
  func.func @_proj_kernel(%arg0: i32, %arg1: memref<16x4xf32, #tpu.memory_space<vmem>>, %arg2: memref<4x128xf32, #tpu.memory_space<vmem>>, %arg3: memref<1x128xf32, #tpu.memory_space<vmem>>, %arg4: memref<16x128xf32, #tpu.memory_space<vmem>>) attributes {dimension_semantics = [#tpu.dimension_semantics<parallel>], iteration_bounds = array<i64: 1>, scalar_prefetch = 0 : i64, scratch_operands = 0 : i64, tpu.core_type = #tpu.core_type<tc>, window_params = [{transform_indices = @transform_0, window_bounds = array<i64: 16, 4>}, {pipeline_mode = #tpu.pipeline_mode<synchronous>, transform_indices = @transform_1, window_bounds = array<i64: 4, 128>}, {pipeline_mode = #tpu.pipeline_mode<synchronous>, transform_indices = @transform_2, window_bounds = array<i64: 1, 128>}, {transform_indices = @transform_3, window_bounds = array<i64: 16, 128>}]} {
    %c0 = arith.constant 0 : index
    %c0_0 = arith.constant 0 : index
    %0 = vector.load %arg1[%c0, %c0_0] : memref<16x4xf32, #tpu.memory_space<vmem>>, vector<16x4xf32>
    %c0_1 = arith.constant 0 : index
    %c0_2 = arith.constant 0 : index
    %1 = vector.load %arg2[%c0_1, %c0_2] : memref<4x128xf32, #tpu.memory_space<vmem>>, vector<4x128xf32>
    %cst = arith.constant dense<0.000000e+00> : vector<16x128xf32>
    %2 = tpu.matmul %0, %1, %cst {dimension_numbers = #tpu.dot_dimension_numbers<[1], [0], [0], [1], [0, 0, 1, 1], [], []>} : vector<16x4xf32>, vector<4x128xf32>, vector<16x128xf32> -> vector<16x128xf32>
    %c0_3 = arith.constant 0 : index
    %c0_4 = arith.constant 0 : index
    %3 = vector.load %arg3[%c0_3, %c0_4] : memref<1x128xf32, #tpu.memory_space<vmem>>, vector<1x128xf32>
    %4 = vector.broadcast %3 : vector<1x128xf32> to vector<16x128xf32>
    %5 = arith.addf %2, %4 : vector<16x128xf32>
    %c0_5 = arith.constant 0 : index
    %c0_6 = arith.constant 0 : index
    %6 = vector.load %arg4[%c0_5, %c0_6] : memref<16x128xf32, #tpu.memory_space<vmem>>, vector<16x128xf32>
    tpu.vector_store %arg4[%c0_5, %c0_6], %5 {strides = array<i32>} : memref<16x128xf32, #tpu.memory_space<vmem>>, vector<16x128xf32>,
    return
  }
  func.func @transform_0(%arg0: i32) -> (i32, i32) {
    %c0_i32 = arith.constant 0 : i32
    %c0_i32_0 = arith.constant 0 : i32
    return %arg0, %c0_i32 : i32, i32
  }
  func.func @transform_1(%arg0: i32) -> (i32, i32) {
    %c0_i32 = arith.constant 0 : i32
    %c0_i32_0 = arith.constant 0 : i32
    %c0_i32_1 = arith.constant 0 : i32
    return %c0_i32, %c0_i32_0 : i32, i32
  }
  func.func @transform_2(%arg0: i32) -> (i32, i32) {
    %c0_i32 = arith.constant 0 : i32
    %c0_i32_0 = arith.constant 0 : i32
    %c0_i32_1 = arith.constant 0 : i32
    return %c0_i32, %c0_i32_0 : i32, i32
  }
  func.func @transform_3(%arg0: i32) -> (i32, i32) {
    %c0_i32 = arith.constant 0 : i32
    %c0_i32_0 = arith.constant 0 : i32
    return %arg0, %c0_i32 : i32, i32
  }
}

module attributes {stable_mosaic.version = 11 : i64} {
  func.func @_rnn_fc_kernel(%arg0: i32, %arg1: memref<2x8x128xf32, #tpu.memory_space<vmem>>, %arg2: memref<128x128xf32, #tpu.memory_space<vmem>>, %arg3: memref<128x128xf32, #tpu.memory_space<vmem>>, %arg4: memref<1x128xf32, #tpu.memory_space<vmem>>, %arg5: memref<128x128xf32, #tpu.memory_space<vmem>>, %arg6: memref<1x128xf32, #tpu.memory_space<vmem>>, %arg7: memref<128x128xf32, #tpu.memory_space<vmem>>, %arg8: memref<1x128xf32, #tpu.memory_space<vmem>>, %arg9: memref<2x8x128xf32, #tpu.memory_space<vmem>>, %arg10: memref<2x128xf32, #tpu.memory_space<vmem>>, %arg11: memref<2x8x128xf32, #tpu.memory_space<vmem>>) attributes {dimension_semantics = [#tpu.dimension_semantics<arbitrary>], iteration_bounds = array<i64: 1>, scalar_prefetch = 0 : i64, scratch_operands = 2 : i64, tpu.core_type = #tpu.core_type<tc>, window_params = [{transform_indices = @transform_0, window_bounds = array<i64: 2, 8, 128>}, {pipeline_mode = #tpu.pipeline_mode<synchronous>, transform_indices = @transform_1, window_bounds = array<i64: 128, 128>}, {pipeline_mode = #tpu.pipeline_mode<synchronous>, transform_indices = @transform_2, window_bounds = array<i64: 128, 128>}, {pipeline_mode = #tpu.pipeline_mode<synchronous>, transform_indices = @transform_3, window_bounds = array<i64: 1, 128>}, {pipeline_mode = #tpu.pipeline_mode<synchronous>, transform_indices = @transform_4, window_bounds = array<i64: 128, 128>}, {pipeline_mode = #tpu.pipeline_mode<synchronous>, transform_indices = @transform_5, window_bounds = array<i64: 1, 128>}, {pipeline_mode = #tpu.pipeline_mode<synchronous>, transform_indices = @transform_6, window_bounds = array<i64: 128, 128>}, {pipeline_mode = #tpu.pipeline_mode<synchronous>, transform_indices = @transform_7, window_bounds = array<i64: 1, 128>}, {transform_indices = @transform_8, window_bounds = array<i64: 2, 8, 128>}]} {
    %c0_i32 = arith.constant 0 : i32
    %0 = arith.cmpi eq, %arg0, %c0_i32 : i32
    %1 = arith.extui %0 : i1 to i32
    %c0_i32_0 = arith.constant 0 : i32
    %2 = arith.cmpi ne, %1, %c0_i32_0 : i32
    scf.if %2 {
      %cst_54 = arith.constant 0.000000e+00 : f32
      %90 = vector.broadcast %cst_54 : f32 to vector<2x128xf32>
      %c0_55 = arith.constant 0 : index
      %c0_56 = arith.constant 0 : index
      %91 = vector.load %arg10[%c0_55, %c0_56] : memref<2x128xf32, #tpu.memory_space<vmem>>, vector<2x128xf32>
      tpu.vector_store %arg10[%c0_55, %c0_56], %90 {strides = array<i32>} : memref<2x128xf32, #tpu.memory_space<vmem>>, vector<2x128xf32>,
    } else {
    }
    %c0 = arith.constant 0 : index
    %c0_1 = arith.constant 0 : index
    %c0_2 = arith.constant 0 : index
    %3 = vector.load %arg1[%c0, %c0_1, %c0_2] : memref<2x8x128xf32, #tpu.memory_space<vmem>>, vector<2x8x128xf32>
    %c0_3 = arith.constant 0 : index
    %c0_4 = arith.constant 0 : index
    %4 = vector.load %arg2[%c0_3, %c0_4] : memref<128x128xf32, #tpu.memory_space<vmem>>, vector<128x128xf32>
    %c0_5 = arith.constant 0 : index
    %c0_6 = arith.constant 0 : index
    %5 = vector.load %arg10[%c0_5, %c0_6] : memref<2x128xf32, #tpu.memory_space<vmem>>, vector<2x128xf32>
    %6 = vector.extract_strided_slice %3 {offsets = [0, 0, 0], sizes = [2, 1, 128], strides = [1, 1, 1]} : vector<2x8x128xf32> to vector<2x1x128xf32>
    %7 = vector.shape_cast %6 : vector<2x1x128xf32> to vector<2x128xf32>
    %cst = arith.constant dense<0.000000e+00> : vector<2x128xf32>
    %8 = tpu.matmul %5, %4, %cst {dimension_numbers = #tpu.dot_dimension_numbers<[1], [0], [0], [1], [0, 0, 1, 1], [], []>} : vector<2x128xf32>, vector<128x128xf32>, vector<2x128xf32> -> vector<2x128xf32>
    %9 = arith.addf %7, %8 : vector<2x128xf32>
    %10 = math.tanh %9 : vector<2x128xf32>
    %c0_7 = arith.constant 0 : index
    %c0_8 = arith.constant 0 : index
    %c0_9 = arith.constant 0 : index
    %11 = vector.load %arg11[%c0_7, %c0_8, %c0_9] : memref<2x8x128xf32, #tpu.memory_space<vmem>>, vector<2x1x128xf32>
    %12 = vector.shape_cast %11 : vector<2x1x128xf32> to vector<2x128xf32>
    %13 = vector.shape_cast %10 : vector<2x128xf32> to vector<2x1x128xf32>
    tpu.vector_store %arg11[%c0_7, %c0_8, %c0_9], %13 {strides = array<i32>} : memref<2x8x128xf32, #tpu.memory_space<vmem>>, vector<2x1x128xf32>,
    %14 = vector.extract_strided_slice %3 {offsets = [0, 1, 0], sizes = [2, 1, 128], strides = [1, 1, 1]} : vector<2x8x128xf32> to vector<2x1x128xf32>
    %15 = vector.shape_cast %14 : vector<2x1x128xf32> to vector<2x128xf32>
    %cst_10 = arith.constant dense<0.000000e+00> : vector<2x128xf32>
    %16 = tpu.matmul %10, %4, %cst_10 {dimension_numbers = #tpu.dot_dimension_numbers<[1], [0], [0], [1], [0, 0, 1, 1], [], []>} : vector<2x128xf32>, vector<128x128xf32>, vector<2x128xf32> -> vector<2x128xf32>
    %17 = arith.addf %15, %16 : vector<2x128xf32>
    %18 = math.tanh %17 : vector<2x128xf32>
    %c0_11 = arith.constant 0 : index
    %c1 = arith.constant 1 : index
    %c0_12 = arith.constant 0 : index
    %19 = vector.load %arg11[%c0_11, %c1, %c0_12] : memref<2x8x128xf32, #tpu.memory_space<vmem>>, vector<2x1x128xf32>
    %20 = vector.shape_cast %19 : vector<2x1x128xf32> to vector<2x128xf32>
    %21 = vector.shape_cast %18 : vector<2x128xf32> to vector<2x1x128xf32>
    tpu.vector_store %arg11[%c0_11, %c1, %c0_12], %21 {strides = array<i32>} : memref<2x8x128xf32, #tpu.memory_space<vmem>>, vector<2x1x128xf32>,
    %22 = vector.extract_strided_slice %3 {offsets = [0, 2, 0], sizes = [2, 1, 128], strides = [1, 1, 1]} : vector<2x8x128xf32> to vector<2x1x128xf32>
    %23 = vector.shape_cast %22 : vector<2x1x128xf32> to vector<2x128xf32>
    %cst_13 = arith.constant dense<0.000000e+00> : vector<2x128xf32>
    %24 = tpu.matmul %18, %4, %cst_13 {dimension_numbers = #tpu.dot_dimension_numbers<[1], [0], [0], [1], [0, 0, 1, 1], [], []>} : vector<2x128xf32>, vector<128x128xf32>, vector<2x128xf32> -> vector<2x128xf32>
    %25 = arith.addf %23, %24 : vector<2x128xf32>
    %26 = math.tanh %25 : vector<2x128xf32>
    %c0_14 = arith.constant 0 : index
    %c2 = arith.constant 2 : index
    %c0_15 = arith.constant 0 : index
    %27 = vector.load %arg11[%c0_14, %c2, %c0_15] : memref<2x8x128xf32, #tpu.memory_space<vmem>>, vector<2x1x128xf32>
    %28 = vector.shape_cast %27 : vector<2x1x128xf32> to vector<2x128xf32>
    %29 = vector.shape_cast %26 : vector<2x128xf32> to vector<2x1x128xf32>
    tpu.vector_store %arg11[%c0_14, %c2, %c0_15], %29 {strides = array<i32>} : memref<2x8x128xf32, #tpu.memory_space<vmem>>, vector<2x1x128xf32>,
    %30 = vector.extract_strided_slice %3 {offsets = [0, 3, 0], sizes = [2, 1, 128], strides = [1, 1, 1]} : vector<2x8x128xf32> to vector<2x1x128xf32>
    %31 = vector.shape_cast %30 : vector<2x1x128xf32> to vector<2x128xf32>
    %cst_16 = arith.constant dense<0.000000e+00> : vector<2x128xf32>
    %32 = tpu.matmul %26, %4, %cst_16 {dimension_numbers = #tpu.dot_dimension_numbers<[1], [0], [0], [1], [0, 0, 1, 1], [], []>} : vector<2x128xf32>, vector<128x128xf32>, vector<2x128xf32> -> vector<2x128xf32>
    %33 = arith.addf %31, %32 : vector<2x128xf32>
    %34 = math.tanh %33 : vector<2x128xf32>
    %c0_17 = arith.constant 0 : index
    %c3 = arith.constant 3 : index
    %c0_18 = arith.constant 0 : index
    %35 = vector.load %arg11[%c0_17, %c3, %c0_18] : memref<2x8x128xf32, #tpu.memory_space<vmem>>, vector<2x1x128xf32>
    %36 = vector.shape_cast %35 : vector<2x1x128xf32> to vector<2x128xf32>
    %37 = vector.shape_cast %34 : vector<2x128xf32> to vector<2x1x128xf32>
    tpu.vector_store %arg11[%c0_17, %c3, %c0_18], %37 {strides = array<i32>} : memref<2x8x128xf32, #tpu.memory_space<vmem>>, vector<2x1x128xf32>,
    %38 = vector.extract_strided_slice %3 {offsets = [0, 4, 0], sizes = [2, 1, 128], strides = [1, 1, 1]} : vector<2x8x128xf32> to vector<2x1x128xf32>
    %39 = vector.shape_cast %38 : vector<2x1x128xf32> to vector<2x128xf32>
    %cst_19 = arith.constant dense<0.000000e+00> : vector<2x128xf32>
    %40 = tpu.matmul %34, %4, %cst_19 {dimension_numbers = #tpu.dot_dimension_numbers<[1], [0], [0], [1], [0, 0, 1, 1], [], []>} : vector<2x128xf32>, vector<128x128xf32>, vector<2x128xf32> -> vector<2x128xf32>
    %41 = arith.addf %39, %40 : vector<2x128xf32>
    %42 = math.tanh %41 : vector<2x128xf32>
    %c0_20 = arith.constant 0 : index
    %c4 = arith.constant 4 : index
    %c0_21 = arith.constant 0 : index
    %43 = vector.load %arg11[%c0_20, %c4, %c0_21] : memref<2x8x128xf32, #tpu.memory_space<vmem>>, vector<2x1x128xf32>
    %44 = vector.shape_cast %43 : vector<2x1x128xf32> to vector<2x128xf32>
    %45 = vector.shape_cast %42 : vector<2x128xf32> to vector<2x1x128xf32>
    tpu.vector_store %arg11[%c0_20, %c4, %c0_21], %45 {strides = array<i32>} : memref<2x8x128xf32, #tpu.memory_space<vmem>>, vector<2x1x128xf32>,
    %46 = vector.extract_strided_slice %3 {offsets = [0, 5, 0], sizes = [2, 1, 128], strides = [1, 1, 1]} : vector<2x8x128xf32> to vector<2x1x128xf32>
    %47 = vector.shape_cast %46 : vector<2x1x128xf32> to vector<2x128xf32>
    %cst_22 = arith.constant dense<0.000000e+00> : vector<2x128xf32>
    %48 = tpu.matmul %42, %4, %cst_22 {dimension_numbers = #tpu.dot_dimension_numbers<[1], [0], [0], [1], [0, 0, 1, 1], [], []>} : vector<2x128xf32>, vector<128x128xf32>, vector<2x128xf32> -> vector<2x128xf32>
    %49 = arith.addf %47, %48 : vector<2x128xf32>
    %50 = math.tanh %49 : vector<2x128xf32>
    %c0_23 = arith.constant 0 : index
    %c5 = arith.constant 5 : index
    %c0_24 = arith.constant 0 : index
    %51 = vector.load %arg11[%c0_23, %c5, %c0_24] : memref<2x8x128xf32, #tpu.memory_space<vmem>>, vector<2x1x128xf32>
    %52 = vector.shape_cast %51 : vector<2x1x128xf32> to vector<2x128xf32>
    %53 = vector.shape_cast %50 : vector<2x128xf32> to vector<2x1x128xf32>
    tpu.vector_store %arg11[%c0_23, %c5, %c0_24], %53 {strides = array<i32>} : memref<2x8x128xf32, #tpu.memory_space<vmem>>, vector<2x1x128xf32>,
    %54 = vector.extract_strided_slice %3 {offsets = [0, 6, 0], sizes = [2, 1, 128], strides = [1, 1, 1]} : vector<2x8x128xf32> to vector<2x1x128xf32>
    %55 = vector.shape_cast %54 : vector<2x1x128xf32> to vector<2x128xf32>
    %cst_25 = arith.constant dense<0.000000e+00> : vector<2x128xf32>
    %56 = tpu.matmul %50, %4, %cst_25 {dimension_numbers = #tpu.dot_dimension_numbers<[1], [0], [0], [1], [0, 0, 1, 1], [], []>} : vector<2x128xf32>, vector<128x128xf32>, vector<2x128xf32> -> vector<2x128xf32>
    %57 = arith.addf %55, %56 : vector<2x128xf32>
    %58 = math.tanh %57 : vector<2x128xf32>
    %c0_26 = arith.constant 0 : index
    %c6 = arith.constant 6 : index
    %c0_27 = arith.constant 0 : index
    %59 = vector.load %arg11[%c0_26, %c6, %c0_27] : memref<2x8x128xf32, #tpu.memory_space<vmem>>, vector<2x1x128xf32>
    %60 = vector.shape_cast %59 : vector<2x1x128xf32> to vector<2x128xf32>
    %61 = vector.shape_cast %58 : vector<2x128xf32> to vector<2x1x128xf32>
    tpu.vector_store %arg11[%c0_26, %c6, %c0_27], %61 {strides = array<i32>} : memref<2x8x128xf32, #tpu.memory_space<vmem>>, vector<2x1x128xf32>,
    %62 = vector.extract_strided_slice %3 {offsets = [0, 7, 0], sizes = [2, 1, 128], strides = [1, 1, 1]} : vector<2x8x128xf32> to vector<2x1x128xf32>
    %63 = vector.shape_cast %62 : vector<2x1x128xf32> to vector<2x128xf32>
    %cst_28 = arith.constant dense<0.000000e+00> : vector<2x128xf32>
    %64 = tpu.matmul %58, %4, %cst_28 {dimension_numbers = #tpu.dot_dimension_numbers<[1], [0], [0], [1], [0, 0, 1, 1], [], []>} : vector<2x128xf32>, vector<128x128xf32>, vector<2x128xf32> -> vector<2x128xf32>
    %65 = arith.addf %63, %64 : vector<2x128xf32>
    %66 = math.tanh %65 : vector<2x128xf32>
    %c0_29 = arith.constant 0 : index
    %c7 = arith.constant 7 : index
    %c0_30 = arith.constant 0 : index
    %67 = vector.load %arg11[%c0_29, %c7, %c0_30] : memref<2x8x128xf32, #tpu.memory_space<vmem>>, vector<2x1x128xf32>
    %68 = vector.shape_cast %67 : vector<2x1x128xf32> to vector<2x128xf32>
    %69 = vector.shape_cast %66 : vector<2x128xf32> to vector<2x1x128xf32>
    tpu.vector_store %arg11[%c0_29, %c7, %c0_30], %69 {strides = array<i32>} : memref<2x8x128xf32, #tpu.memory_space<vmem>>, vector<2x1x128xf32>,
    %c0_31 = arith.constant 0 : index
    %c0_32 = arith.constant 0 : index
    %70 = vector.load %arg10[%c0_31, %c0_32] : memref<2x128xf32, #tpu.memory_space<vmem>>, vector<2x128xf32>
    tpu.vector_store %arg10[%c0_31, %c0_32], %66 {strides = array<i32>} : memref<2x128xf32, #tpu.memory_space<vmem>>, vector<2x128xf32>,
    %c0_33 = arith.constant 0 : index
    %c0_34 = arith.constant 0 : index
    %c0_35 = arith.constant 0 : index
    %71 = vector.load %arg11[%c0_33, %c0_34, %c0_35] : memref<2x8x128xf32, #tpu.memory_space<vmem>>, vector<2x8x128xf32>
    %72 = vector.shape_cast %71 : vector<2x8x128xf32> to vector<16x128xf32>
    %c0_36 = arith.constant 0 : index
    %c0_37 = arith.constant 0 : index
    %73 = vector.load %arg3[%c0_36, %c0_37] : memref<128x128xf32, #tpu.memory_space<vmem>>, vector<128x128xf32>
    %cst_38 = arith.constant dense<0.000000e+00> : vector<16x128xf32>
    %74 = tpu.matmul %72, %73, %cst_38 {dimension_numbers = #tpu.dot_dimension_numbers<[1], [0], [0], [1], [0, 0, 1, 1], [], []>} : vector<16x128xf32>, vector<128x128xf32>, vector<16x128xf32> -> vector<16x128xf32>
    %c0_39 = arith.constant 0 : index
    %c0_40 = arith.constant 0 : index
    %75 = vector.load %arg4[%c0_39, %c0_40] : memref<1x128xf32, #tpu.memory_space<vmem>>, vector<1x128xf32>
    %76 = vector.broadcast %75 : vector<1x128xf32> to vector<16x128xf32>
    %77 = arith.addf %74, %76 : vector<16x128xf32>
    %c0_41 = arith.constant 0 : index
    %c0_42 = arith.constant 0 : index
    %78 = vector.load %arg5[%c0_41, %c0_42] : memref<128x128xf32, #tpu.memory_space<vmem>>, vector<128x128xf32>
    %cst_43 = arith.constant dense<0.000000e+00> : vector<16x128xf32>
    %79 = tpu.matmul %77, %78, %cst_43 {dimension_numbers = #tpu.dot_dimension_numbers<[1], [0], [0], [1], [0, 0, 1, 1], [], []>} : vector<16x128xf32>, vector<128x128xf32>, vector<16x128xf32> -> vector<16x128xf32>
    %c0_44 = arith.constant 0 : index
    %c0_45 = arith.constant 0 : index
    %80 = vector.load %arg6[%c0_44, %c0_45] : memref<1x128xf32, #tpu.memory_space<vmem>>, vector<1x128xf32>
    %81 = vector.broadcast %80 : vector<1x128xf32> to vector<16x128xf32>
    %82 = arith.addf %79, %81 : vector<16x128xf32>
    %c0_46 = arith.constant 0 : index
    %c0_47 = arith.constant 0 : index
    %83 = vector.load %arg7[%c0_46, %c0_47] : memref<128x128xf32, #tpu.memory_space<vmem>>, vector<128x128xf32>
    %cst_48 = arith.constant dense<0.000000e+00> : vector<16x128xf32>
    %84 = tpu.matmul %82, %83, %cst_48 {dimension_numbers = #tpu.dot_dimension_numbers<[1], [0], [0], [1], [0, 0, 1, 1], [], []>} : vector<16x128xf32>, vector<128x128xf32>, vector<16x128xf32> -> vector<16x128xf32>
    %c0_49 = arith.constant 0 : index
    %c0_50 = arith.constant 0 : index
    %85 = vector.load %arg8[%c0_49, %c0_50] : memref<1x128xf32, #tpu.memory_space<vmem>>, vector<1x128xf32>
    %86 = vector.broadcast %85 : vector<1x128xf32> to vector<16x128xf32>
    %87 = arith.addf %84, %86 : vector<16x128xf32>
    %88 = vector.shape_cast %87 : vector<16x128xf32> to vector<2x8x128xf32>
    %c0_51 = arith.constant 0 : index
    %c0_52 = arith.constant 0 : index
    %c0_53 = arith.constant 0 : index
    %89 = vector.load %arg9[%c0_51, %c0_52, %c0_53] : memref<2x8x128xf32, #tpu.memory_space<vmem>>, vector<2x8x128xf32>
    tpu.vector_store %arg9[%c0_51, %c0_52, %c0_53], %88 {strides = array<i32>} : memref<2x8x128xf32, #tpu.memory_space<vmem>>, vector<2x8x128xf32>,
    return
  }
  func.func @transform_0(%arg0: i32) -> (i32, i32, i32) {
    %c0_i32 = arith.constant 0 : i32
    %c0_i32_0 = arith.constant 0 : i32
    %c0_i32_1 = arith.constant 0 : i32
    return %c0_i32, %arg0, %c0_i32_0 : i32, i32, i32
  }
  func.func @transform_1(%arg0: i32) -> (i32, i32) {
    %c0_i32 = arith.constant 0 : i32
    %c0_i32_0 = arith.constant 0 : i32
    %c0_i32_1 = arith.constant 0 : i32
    return %c0_i32, %c0_i32_0 : i32, i32
  }
  func.func @transform_2(%arg0: i32) -> (i32, i32) {
    %c0_i32 = arith.constant 0 : i32
    %c0_i32_0 = arith.constant 0 : i32
    %c0_i32_1 = arith.constant 0 : i32
    return %c0_i32, %c0_i32_0 : i32, i32
  }
  func.func @transform_3(%arg0: i32) -> (i32, i32) {
    %c0_i32 = arith.constant 0 : i32
    %c0_i32_0 = arith.constant 0 : i32
    %c0_i32_1 = arith.constant 0 : i32
    return %c0_i32, %c0_i32_0 : i32, i32
  }
  func.func @transform_4(%arg0: i32) -> (i32, i32) {
    %c0_i32 = arith.constant 0 : i32
    %c0_i32_0 = arith.constant 0 : i32
    %c0_i32_1 = arith.constant 0 : i32
    return %c0_i32, %c0_i32_0 : i32, i32
  }
  func.func @transform_5(%arg0: i32) -> (i32, i32) {
    %c0_i32 = arith.constant 0 : i32
    %c0_i32_0 = arith.constant 0 : i32
    %c0_i32_1 = arith.constant 0 : i32
    return %c0_i32, %c0_i32_0 : i32, i32
  }
  func.func @transform_6(%arg0: i32) -> (i32, i32) {
    %c0_i32 = arith.constant 0 : i32
    %c0_i32_0 = arith.constant 0 : i32
    %c0_i32_1 = arith.constant 0 : i32
    return %c0_i32, %c0_i32_0 : i32, i32
  }
  func.func @transform_7(%arg0: i32) -> (i32, i32) {
    %c0_i32 = arith.constant 0 : i32
    %c0_i32_0 = arith.constant 0 : i32
    %c0_i32_1 = arith.constant 0 : i32
    return %c0_i32, %c0_i32_0 : i32, i32
  }
  func.func @transform_8(%arg0: i32) -> (i32, i32, i32) {
    %c0_i32 = arith.constant 0 : i32
    %c0_i32_0 = arith.constant 0 : i32
    %c0_i32_1 = arith.constant 0 : i32
    return %c0_i32, %arg0, %c0_i32_0 : i32, i32, i32
  }
}

</mosaic_0001>

<llo_original>
// kernel: rnn_model_forward.2
$region0: #{rnn_model_forward.2}
  #allocation0 [shape = 'u32[]', space=smem, size = 0x4, offset = 0x4, fixed_abs, tag = 'smem constant byte address 0x4 - core index']
  #allocation1 [shape = 'u32[144,128]{1,0:T(1,128)}', space=vmem, size = 0x12000, scoped, tag = 'internal scratch']
  %s0 = inlined_call_operand.vmem [shape: f32[16,4], index: 0, kind: input, shape index: {}]
  %s1 = inlined_call_operand.vmem [shape: f32[4,128], index: 1, kind: input, shape index: {}]
  %s2 = inlined_call_operand.vmem [shape: f32[1,128], index: 2, kind: input, shape index: {}]
  %s3 = inlined_call_operand.vmem [shape: f32[16,128], index: 3, kind: output, shape index: {}]
  %s4 = sld [smem:[#allocation0]]
  $region22: #{rnn_model_forward.2} parent=0
    _
  %s6 = ssub.s32 1, %s4
  %s7 = scalar_select 0, %s6, %s4
  // Predicated region
  $region2: #{rnn_model_forward.2} parent=0 // pred_check
    _
  $region3: #{rnn_model_forward.2} parent=0 // pred_check_branch
    %9 = sbr.rel (0) target = $region5
  $region4: #{rnn_model_forward.2} parent=0 // pred_region
    _
  $region5: #{rnn_model_forward.2} parent=0 // pred_fallthru
    _
  // Predicated region
  $region6: #{rnn_model_forward.2} parent=0 // pred_check
    _
  $region7: #{rnn_model_forward.2} parent=0 // pred_check_branch
    %11 = sbr.rel (0) target = $region9
  $region8: #{rnn_model_forward.2} parent=0 // pred_region
    _
  $region9: #{rnn_model_forward.2} parent=0 // pred_fallthru
    _
  // Predicated region
  $region10: #{rnn_model_forward.2} parent=0 // pred_check
    _
  $region11: #{rnn_model_forward.2} parent=0 // pred_check_branch
    %13 = sbr.rel (0) target = $region13
  $region12: #{rnn_model_forward.2} parent=0 // pred_region
    _
  $region13: #{rnn_model_forward.2} parent=0 // pred_fallthru
    _
  %v14 = vld [vmem:[%s0] sm:$0xff]
  %v15 = vld [vmem:[%s0 + $0x8] sm:$0xff]
  %v16 = vld [vmem:[%s1] sm:$0xf]
  %v17 = vld [vmem:[%s2] sm:$0x1]
  %v19 = vlaneseq
  %v20 = vshrl.u32 %v19, 7
  %v21 = vsub.s32 0, %v20
  %v22 = vrot.slane %v17, %v21
  %vm24 = vcmask 31744
  %v26 = vsel %vm24, %v14, 0
  %v29 = vsel %vm24, %v15, 0
  %vm31 = vcmask 1043456
  %v33 = vsel %vm31, %v16, 0
  %35 = vmatprep.subr.mxu0 0.0
  %36 = vmatpush1.msra.mxu0 0.0
  %37 = vmatprep.subr.mxu0 0.0
  %38 = vmatpush1.msra.mxu0 0.0
  %39 = vmatprep.subr.mxu0 0.0
  %40 = vmatpush1.msra.mxu0 0.0
  %41 = vmatprep.subr.mxu0 0.0
  %42 = vmatpush1.msra.mxu0 0.0
  %43 = vmatprep.subr.mxu0 0.0
  %44 = vmatpush1.msra.mxu0 0.0
  %45 = vmatprep.subr.mxu0 0.0
  %46 = vmatpush1.msra.mxu0 0.0
  %47 = vmatprep.subr.mxu0 0.0
  %48 = vmatpush1.msra.mxu0 0.0
  %49 = vmatprep.subr.mxu0 0.0
  %50 = vmatpush1.msra.mxu0 0.0
  %51 = vmatprep.subr.mxu0 0.0
  %52 = vmatpush1.msra.mxu0 0.0
  %53 = vmatprep.subr.mxu0 0.0
  %54 = vmatpush1.msra.mxu0 0.0
  %55 = vmatprep.subr.mxu0 0.0
  %56 = vmatpush1.msra.mxu0 0.0
  %57 = vmatprep.subr.mxu0 0.0
  %58 = vmatpush1.msra.mxu0 0.0
  %59 = vmatprep.subr.mxu0 0.0
  %60 = vmatpush1.msra.mxu0 0.0
  %61 = vmatprep.subr.mxu0 0.0
  %62 = vmatpush1.msra.mxu0 0.0
  %63 = vmatprep.subr.mxu0 0.0
  %64 = vmatpush1.msra.mxu0 0.0
  %65 = vmatprep.subr.mxu0 0.0
  %66 = vmatpush1.msra.mxu0 %v33
  %67 = vmatprep.subr.mxu0 0.0
  %68 = vmatpush2.msra.mxu0 0.0
  %69 = vmatprep.subr.mxu0 0.0
  %70 = vmatpush2.msra.mxu0 0.0
  %71 = vmatprep.subr.mxu0 0.0
  %72 = vmatpush2.msra.mxu0 0.0
  %73 = vmatprep.subr.mxu0 0.0
  %74 = vmatpush2.msra.mxu0 0.0
  %75 = vmatprep.subr.mxu0 0.0
  %76 = vmatpush2.msra.mxu0 0.0
  %77 = vmatprep.subr.mxu0 0.0
  %78 = vmatpush2.msra.mxu0 0.0
  %79 = vmatprep.subr.mxu0 0.0
  %80 = vmatpush2.msra.mxu0 0.0
  %81 = vmatprep.subr.mxu0 0.0
  %82 = vmatpush2.msra.mxu0 0.0
  %83 = vmatprep.subr.mxu0 0.0
  %84 = vmatpush2.msra.mxu0 0.0
  %85 = vmatprep.subr.mxu0 0.0
  %86 = vmatpush2.msra.mxu0 0.0
  %87 = vmatprep.subr.mxu0 0.0
  %88 = vmatpush2.msra.mxu0 0.0
  %89 = vmatprep.subr.mxu0 0.0
  %90 = vmatpush2.msra.mxu0 0.0
  %91 = vmatprep.subr.mxu0 0.0
  %92 = vmatpush2.msra.mxu0 0.0
  %93 = vmatprep.subr.mxu0 0.0
  %94 = vmatpush2.msra.mxu0 0.0
  %95 = vmatprep.subr.mxu0 0.0
  %96 = vmatpush2.msra.mxu0 0.0
  %97 = vmatprep.subr.mxu0 0.0
  %98 = vmatpush2.msra.mxu0 0.0
  %99 = vmatprep.mubr.f32.mxu0 0.0
  %100 = vmatmul.mubr.f32.gmra.mxu0 %v26
  %v101 = vpop.f32.mrf.mxu0
  %v102 = vadd.f32 %v22, %v101
  %v103 = vpop.f32.mrf.mxu0
  %104 = vmatprep.mubr.f32.mxu0 0.0
  %105 = vmatmul.mubr.f32.gmra.mxu0 %v29
  %v106 = vpop.f32.mrf.mxu0
  %v107 = vadd.f32 %v22, %v106
  %v108 = vpop.f32.mrf.mxu0
  %109 = vdwg.mxu0
  %110 = vst [vmem:[%s3] sm:$0xff] %v102
  %111 = vst [vmem:[%s3 + $0x8] sm:$0xff] %v107
  // Predicated region
  $region14: #{rnn_model_forward.2} parent=0 // pred_check
    _
  $region15: #{rnn_model_forward.2} parent=0 // pred_check_branch
    %113 = sbr.rel (0) target = $region17
  $region16: #{rnn_model_forward.2} parent=0 // pred_region
    _
  $region17: #{rnn_model_forward.2} parent=0 // pred_fallthru
    _
  // Predicated region
  $region18: #{rnn_model_forward.2} parent=0 // pred_check
    _
  $region19: #{rnn_model_forward.2} parent=0 // pred_check_branch
    %115 = sbr.rel (0) target = $region21
  $region20: #{rnn_model_forward.2} parent=0 // pred_region
    _
  $region21: #{rnn_model_forward.2} parent=0 // pred_fallthru
    _

// kernel: rnn_model_forward.3
$region0: #{rnn_model_forward.3}
  #allocation0 [shape = 'u32[]', space=smem, size = 0x4, offset = 0x4, fixed_abs, tag = 'smem constant byte address 0x4 - core index']
  #allocation1 [shape = 'u32[144,128]{1,0:T(1,128)}', space=vmem, size = 0x12000, scoped, tag = 'internal scratch']
  #allocation2 [shape = 'f32[2,128]{1,0:T(2,128)}', space=vmem, size = 0x400, scoped, tag = 'scratch operand']
  #allocation3 [shape = 'f32[2,8,128]{2,1,0:T(8,128)}', space=vmem, size = 0x2000, scoped, tag = 'scratch operand']
  %s0 = inlined_call_operand.vmem [shape: f32[2,8,128], index: 0, kind: input, shape index: {}]
  %s1 = inlined_call_operand.vmem [shape: f32[128,128], index: 1, kind: input, shape index: {}]
  %s2 = inlined_call_operand.vmem [shape: f32[128,128], index: 2, kind: input, shape index: {}]
  %s3 = inlined_call_operand.vmem [shape: f32[1,128], index: 3, kind: input, shape index: {}]
  %s4 = inlined_call_operand.vmem [shape: f32[128,128], index: 4, kind: input, shape index: {}]
  %s5 = inlined_call_operand.vmem [shape: f32[1,128], index: 5, kind: input, shape index: {}]
  %s6 = inlined_call_operand.vmem [shape: f32[128,128], index: 6, kind: input, shape index: {}]
  %s7 = inlined_call_operand.vmem [shape: f32[1,128], index: 7, kind: input, shape index: {}]
  %s8 = inlined_call_operand.hbm [shape: f32[2,8,128], index: 8, kind: output, shape index: {}]
  %s9 = sld [smem:[#allocation0]]
  $region46: #{rnn_model_forward.3} parent=0
    _
  %s11 = ssub.s32 1, %s9
  %s12 = scalar_select 0, %s11, %s9
  $region1: #{rnn_model_forward.3} parent=0
    #allocation4 [shape = 'u8[8192]{0}', space=vmem, size = 0x2000, scoped, tag = 'output window, operand 0, single buffered']
    #allocation5 [shape = 's32[1]{0}', space=sflag, size = 0x4, scoped, tag = 'scoped memory for rnn_model_forward.3']
    %13 = vsyncpa [#allocation5], 0
    // Predicated region
    $region2: #{rnn_model_forward.3} parent=1 // pred_check
      _
    $region3: #{rnn_model_forward.3} parent=1 // pred_check_branch
      %15 = sbr.rel (0) target = $region5
    $region4: #{rnn_model_forward.3} parent=1 // pred_region
      _
    $region5: #{rnn_model_forward.3} parent=1 // pred_fallthru
      _
    // Predicated region
    $region6: #{rnn_model_forward.3} parent=1 // pred_check
      _
    $region7: #{rnn_model_forward.3} parent=1 // pred_check_branch
      %17 = sbr.rel (0) target = $region9
    $region8: #{rnn_model_forward.3} parent=1 // pred_region
      _
    $region9: #{rnn_model_forward.3} parent=1 // pred_fallthru
      _
    // Predicated region
    $region10: #{rnn_model_forward.3} parent=1 // pred_check
      _
    $region11: #{rnn_model_forward.3} parent=1 // pred_check_branch
      %19 = sbr.rel (0) target = $region13
    $region12: #{rnn_model_forward.3} parent=1 // pred_region
      _
    $region13: #{rnn_model_forward.3} parent=1 // pred_fallthru
      _
    // Predicated region
    $region14: #{rnn_model_forward.3} parent=1 // pred_check
      _
    $region15: #{rnn_model_forward.3} parent=1 // pred_check_branch
      %21 = sbr.rel (0) target = $region17
    $region16: #{rnn_model_forward.3} parent=1 // pred_region
      _
    $region17: #{rnn_model_forward.3} parent=1 // pred_fallthru
      _
    // Predicated region
    $region18: #{rnn_model_forward.3} parent=1 // pred_check
      _
    $region19: #{rnn_model_forward.3} parent=1 // pred_check_branch
      %23 = sbr.rel (0) target = $region21
    $region20: #{rnn_model_forward.3} parent=1 // pred_region
      _
    $region21: #{rnn_model_forward.3} parent=1 // pred_fallthru
      _
    // Predicated region
    $region22: #{rnn_model_forward.3} parent=1 // pred_check
      _
    $region23: #{rnn_model_forward.3} parent=1 // pred_check_branch
      %25 = sbr.rel (0) target = $region25
    $region24: #{rnn_model_forward.3} parent=1 // pred_region
      _
    $region25: #{rnn_model_forward.3} parent=1 // pred_fallthru
      _
    // Predicated region
    $region26: #{rnn_model_forward.3} parent=1 // pred_check
      _
    $region27: #{rnn_model_forward.3} parent=1 // pred_check_branch
      %27 = sbr.rel (0) target = $region29
    $region28: #{rnn_model_forward.3} parent=1 // pred_region
      _
    $region29: #{rnn_model_forward.3} parent=1 // pred_fallthru
      _
    // Predicated region
    $region30: #{rnn_model_forward.3} parent=1 // pred_check
      _
    $region31: #{rnn_model_forward.3} parent=1 // pred_check_branch
      %29 = sbr.rel (0) target = $region33
    $region32: #{rnn_model_forward.3} parent=1 // pred_region
      _
    $region33: #{rnn_model_forward.3} parent=1 // pred_fallthru
      _
    %p30 = scmp.eq.s32.totalorder 0, 0
    // Predicated region
    $region34: #{rnn_model_forward.3} parent=1 // pred_check
      %p31 = pneg %p30
    $region35: #{rnn_model_forward.3} parent=1 // pred_check_branch
      %33 = sbr.rel (%p31) target = $region37
    $region36: #{rnn_model_forward.3} parent=1 // pred_region
      %34 = vst [vmem:[#allocation2] sm:$0x3] 0.0
    $region37: #{rnn_model_forward.3} parent=1 // pred_fallthru
      _
    %v35 = vld [vmem:[%s0] sm:$0xff]
    %v36 = vld [vmem:[%s0 + $0x8] sm:$0xff]
    %v37 = vld [vmem:[%s1] sm:$0xff]
    %v38 = vld [vmem:[%s1 + $0x8] sm:$0xff]
    %v39 = vld [vmem:[%s1 + $0x10] sm:$0xff]
    %v40 = vld [vmem:[%s1 + $0x18] sm:$0xff]
    %v41 = vld [vmem:[%s1 + $0x20] sm:$0xff]
    %v42 = vld [vmem:[%s1 + $0x28] sm:$0xff]
    %v43 = vld [vmem:[%s1 + $0x30] sm:$0xff]
    %v44 = vld [vmem:[%s1 + $0x38] sm:$0xff]
    %v45 = vld [vmem:[%s1 + $0x40] sm:$0xff]
    %v46 = vld [vmem:[%s1 + $0x48] sm:$0xff]
    %v47 = vld [vmem:[%s1 + $0x50] sm:$0xff]
    %v48 = vld [vmem:[%s1 + $0x58] sm:$0xff]
    %v49 = vld [vmem:[%s1 + $0x60] sm:$0xff]
    %v50 = vld [vmem:[%s1 + $0x68] sm:$0xff]
    %v51 = vld [vmem:[%s1 + $0x70] sm:$0xff]
    %v52 = vld [vmem:[%s1 + $0x78] sm:$0xff]
    %v53 = vld [vmem:[#allocation2] sm:$0x3]
    %54 = vmatprep.subr.mxu0 0.0
    %55 = vmatpush1.msra.mxu0 %v52
    %56 = vmatprep.subr.mxu0 0.0
    %57 = vmatpush1.msra.mxu0 %v51
    %58 = vmatprep.subr.mxu0 0.0
    %59 = vmatpush1.msra.mxu0 %v50
    %60 = vmatprep.subr.mxu0 0.0
    %61 = vmatpush1.msra.mxu0 %v49
    %62 = vmatprep.subr.mxu0 0.0
    %63 = vmatpush1.msra.mxu0 %v48
    %64 = vmatprep.subr.mxu0 0.0
    %65 = vmatpush1.msra.mxu0 %v47
    %66 = vmatprep.subr.mxu0 0.0
    %67 = vmatpush1.msra.mxu0 %v46
    %68 = vmatprep.subr.mxu0 0.0
    %69 = vmatpush1.msra.mxu0 %v45
    %70 = vmatprep.subr.mxu0 0.0
    %71 = vmatpush1.msra.mxu0 %v44
    %72 = vmatprep.subr.mxu0 0.0
    %73 = vmatpush1.msra.mxu0 %v43
    %74 = vmatprep.subr.mxu0 0.0
    %75 = vmatpush1.msra.mxu0 %v42
    %76 = vmatprep.subr.mxu0 0.0
    %77 = vmatpush1.msra.mxu0 %v41
    %78 = vmatprep.subr.mxu0 0.0
    %79 = vmatpush1.msra.mxu0 %v40
    %80 = vmatprep.subr.mxu0 0.0
    %81 = vmatpush1.msra.mxu0 %v39
    %82 = vmatprep.subr.mxu0 0.0
    %83 = vmatpush1.msra.mxu0 %v38
    %84 = vmatprep.subr.mxu0 0.0
    %85 = vmatpush1.msra.mxu0 %v37
    %86 = vmatprep.subr.mxu0 0.0
    %87 = vmatpush2.msra.mxu0 0.0
    %88 = vmatprep.subr.mxu0 0.0
    %89 = vmatpush2.msra.mxu0 0.0
    %90 = vmatprep.subr.mxu0 0.0
    %91 = vmatpush2.msra.mxu0 0.0
    %92 = vmatprep.subr.mxu0 0.0
    %93 = vmatpush2.msra.mxu0 0.0
    %94 = vmatprep.subr.mxu0 0.0
    %95 = vmatpush2.msra.mxu0 0.0
    %96 = vmatprep.subr.mxu0 0.0
    %97 = vmatpush2.msra.mxu0 0.0
    %98 = vmatprep.subr.mxu0 0.0
    %99 = vmatpush2.msra.mxu0 0.0
    %100 = vmatprep.subr.mxu0 0.0
    %101 = vmatpush2.msra.mxu0 0.0
    %102 = vmatprep.subr.mxu0 0.0
    %103 = vmatpush2.msra.mxu0 0.0
    %104 = vmatprep.subr.mxu0 0.0
    %105 = vmatpush2.msra.mxu0 0.0
    %106 = vmatprep.subr.mxu0 0.0
    %107 = vmatpush2.msra.mxu0 0.0
    %108 = vmatprep.subr.mxu0 0.0
    %109 = vmatpush2.msra.mxu0 0.0
    %110 = vmatprep.subr.mxu0 0.0
    %111 = vmatpush2.msra.mxu0 0.0
    %112 = vmatprep.subr.mxu0 0.0
    %113 = vmatpush2.msra.mxu0 0.0
    %114 = vmatprep.subr.mxu0 0.0
    %115 = vmatpush2.msra.mxu0 0.0
    %116 = vmatprep.subr.mxu0 0.0
    %117 = vmatpush2.msra.mxu0 0.0
    %118 = vmatprep.mubr.f32.mxu0 0.0
    %119 = vmatmul.mubr.f32.gmra.mxu0 %v53
    %v120 = vpop.f32.mrf.mxu0
    %v121 = vadd.f32 0.0, %v120
    %v122 = vpop.f32.mrf.mxu0
    %123 = vdwg.mxu0
    %v125 = vrot.slane %v121, 1
    %v128 = vadd.f32 %v35, %v121
    %v129 = vadd.f32 %v36, %v125
    %v130 = vtanh.pop %v128
    %v131 = vtanh.pop %v129
    %132 = vst [vmem:[#allocation3] sm:$0x1] %v130
    %133 = vst [vmem:[#allocation3 + $0x8] sm:$0x1] %v131
    %v136 = vrot.slane %v131, 7
    %vm137 = vcmask 1041409
    %v138 = vsel %vm137, %v136, %v130
    %140 = vmatprep.subr.mxu0 0.0
    %141 = vmatpush1.msra.mxu0 %v52
    %142 = vmatprep.subr.mxu0 0.0
    %143 = vmatpush1.msra.mxu0 %v51
    %144 = vmatprep.subr.mxu0 0.0
    %145 = vmatpush1.msra.mxu0 %v50
    %146 = vmatprep.subr.mxu0 0.0
    %147 = vmatpush1.msra.mxu0 %v49
    %148 = vmatprep.subr.mxu0 0.0
    %149 = vmatpush1.msra.mxu0 %v48
    %150 = vmatprep.subr.mxu0 0.0
    %151 = vmatpush1.msra.mxu0 %v47
    %152 = vmatprep.subr.mxu0 0.0
    %153 = vmatpush1.msra.mxu0 %v46
    %154 = vmatprep.subr.mxu0 0.0
    %155 = vmatpush1.msra.mxu0 %v45
    %156 = vmatprep.subr.mxu0 0.0
    %157 = vmatpush1.msra.mxu0 %v44
    %158 = vmatprep.subr.mxu0 0.0
    %159 = vmatpush1.msra.mxu0 %v43
    %160 = vmatprep.subr.mxu0 0.0
    %161 = vmatpush1.msra.mxu0 %v42
    %162 = vmatprep.subr.mxu0 0.0
    %163 = vmatpush1.msra.mxu0 %v41
    %164 = vmatprep.subr.mxu0 0.0
    %165 = vmatpush1.msra.mxu0 %v40
    %166 = vmatprep.subr.mxu0 0.0
    %167 = vmatpush1.msra.mxu0 %v39
    %168 = vmatprep.subr.mxu0 0.0
    %169 = vmatpush1.msra.mxu0 %v38
    %170 = vmatprep.subr.mxu0 0.0
    %171 = vmatpush1.msra.mxu0 %v37
    %172 = vmatprep.subr.mxu0 0.0
    %173 = vmatpush2.msra.mxu0 0.0
    %174 = vmatprep.subr.mxu0 0.0
    %175 = vmatpush2.msra.mxu0 0.0
    %176 = vmatprep.subr.mxu0 0.0
    %177 = vmatpush2.msra.mxu0 0.0
    %178 = vmatprep.subr.mxu0 0.0
    %179 = vmatpush2.msra.mxu0 0.0
    %180 = vmatprep.subr.mxu0 0.0
    %181 = vmatpush2.msra.mxu0 0.0
    %182 = vmatprep.subr.mxu0 0.0
    %183 = vmatpush2.msra.mxu0 0.0
    %184 = vmatprep.subr.mxu0 0.0
    %185 = vmatpush2.msra.mxu0 0.0
    %186 = vmatprep.subr.mxu0 0.0
    %187 = vmatpush2.msra.mxu0 0.0
    %188 = vmatprep.subr.mxu0 0.0
    %189 = vmatpush2.msra.mxu0 0.0
    %190 = vmatprep.subr.mxu0 0.0
    %191 = vmatpush2.msra.mxu0 0.0
    %192 = vmatprep.subr.mxu0 0.0
    %193 = vmatpush2.msra.mxu0 0.0
    %194 = vmatprep.subr.mxu0 0.0
    %195 = vmatpush2.msra.mxu0 0.0
    %196 = vmatprep.subr.mxu0 0.0
    %197 = vmatpush2.msra.mxu0 0.0
    %198 = vmatprep.subr.mxu0 0.0
    %199 = vmatpush2.msra.mxu0 0.0
    %200 = vmatprep.subr.mxu0 0.0
    %201 = vmatpush2.msra.mxu0 0.0
    %202 = vmatprep.subr.mxu0 0.0
    %203 = vmatpush2.msra.mxu0 0.0
    %204 = vmatprep.mubr.f32.mxu0 0.0
    %205 = vmatmul.mubr.f32.gmra.mxu0 %v138
    %v206 = vpop.f32.mrf.mxu0
    %v207 = vadd.f32 0.0, %v206
    %v208 = vpop.f32.mrf.mxu0
    %209 = vdwg.mxu0
    %v211 = vrot.slane %v207, 7
    %v214 = vadd.f32 %v35, %v211
    %v215 = vadd.f32 %v36, %v207
    %v216 = vtanh.pop %v214
    %v217 = vtanh.pop %v215
    %218 = vst [vmem:[#allocation3] sm:$0x2] %v216
    %219 = vst [vmem:[#allocation3 + $0x8] sm:$0x2] %v217
    %v222 = vrot.slane %v216, 1
    %v223 = vsel %vm137, %v217, %v222
    %225 = vmatprep.subr.mxu0 0.0
    %226 = vmatpush1.msra.mxu0 %v52
    %227 = vmatprep.subr.mxu0 0.0
    %228 = vmatpush1.msra.mxu0 %v51
    %229 = vmatprep.subr.mxu0 0.0
    %230 = vmatpush1.msra.mxu0 %v50
    %231 = vmatprep.subr.mxu0 0.0
    %232 = vmatpush1.msra.mxu0 %v49
    %233 = vmatprep.subr.mxu0 0.0
    %234 = vmatpush1.msra.mxu0 %v48
    %235 = vmatprep.subr.mxu0 0.0
    %236 = vmatpush1.msra.mxu0 %v47
    %237 = vmatprep.subr.mxu0 0.0
    %238 = vmatpush1.msra.mxu0 %v46
    %239 = vmatprep.subr.mxu0 0.0
    %240 = vmatpush1.msra.mxu0 %v45
    %241 = vmatprep.subr.mxu0 0.0
    %242 = vmatpush1.msra.mxu0 %v44
    %243 = vmatprep.subr.mxu0 0.0
    %244 = vmatpush1.msra.mxu0 %v43
    %245 = vmatprep.subr.mxu0 0.0
    %246 = vmatpush1.msra.mxu0 %v42
    %247 = vmatprep.subr.mxu0 0.0
    %248 = vmatpush1.msra.mxu0 %v41
    %249 = vmatprep.subr.mxu0 0.0
    %250 = vmatpush1.msra.mxu0 %v40
    %251 = vmatprep.subr.mxu0 0.0
    %252 = vmatpush1.msra.mxu0 %v39
    %253 = vmatprep.subr.mxu0 0.0
    %254 = vmatpush1.msra.mxu0 %v38
    %255 = vmatprep.subr.mxu0 0.0
    %256 = vmatpush1.msra.mxu0 %v37
    %257 = vmatprep.subr.mxu0 0.0
    %258 = vmatpush2.msra.mxu0 0.0
    %259 = vmatprep.subr.mxu0 0.0
    %260 = vmatpush2.msra.mxu0 0.0
    %261 = vmatprep.subr.mxu0 0.0
    %262 = vmatpush2.msra.mxu0 0.0
    %263 = vmatprep.subr.mxu0 0.0
    %264 = vmatpush2.msra.mxu0 0.0
    %265 = vmatprep.subr.mxu0 0.0
    %266 = vmatpush2.msra.mxu0 0.0
    %267 = vmatprep.subr.mxu0 0.0
    %268 = vmatpush2.msra.mxu0 0.0
    %269 = vmatprep.subr.mxu0 0.0
    %270 = vmatpush2.msra.mxu0 0.0
    %271 = vmatprep.subr.mxu0 0.0
    %272 = vmatpush2.msra.mxu0 0.0
    %273 = vmatprep.subr.mxu0 0.0
    %274 = vmatpush2.msra.mxu0 0.0
    %275 = vmatprep.subr.mxu0 0.0
    %276 = vmatpush2.msra.mxu0 0.0
    %277 = vmatprep.subr.mxu0 0.0
    %278 = vmatpush2.msra.mxu0 0.0
    %279 = vmatprep.subr.mxu0 0.0
    %280 = vmatpush2.msra.mxu0 0.0
    %281 = vmatprep.subr.mxu0 0.0
    %282 = vmatpush2.msra.mxu0 0.0
    %283 = vmatprep.subr.mxu0 0.0
    %284 = vmatpush2.msra.mxu0 0.0
    %285 = vmatprep.subr.mxu0 0.0
    %286 = vmatpush2.msra.mxu0 0.0
    %287 = vmatprep.subr.mxu0 0.0
    %288 = vmatpush2.msra.mxu0 0.0
    %289 = vmatprep.mubr.f32.mxu0 0.0
    %290 = vmatmul.mubr.f32.gmra.mxu0 %v223
    %v291 = vpop.f32.mrf.mxu0
    %v292 = vadd.f32 0.0, %v291
    %v293 = vpop.f32.mrf.mxu0
    %294 = vdwg.mxu0
    %v296 = vrot.slane %v292, 6
    %v297 = vrot.slane %v292, 7
    %v300 = vadd.f32 %v35, %v296
    %v301 = vadd.f32 %v36, %v297
    %v302 = vtanh.pop %v300
    %v303 = vtanh.pop %v301
    %304 = vst [vmem:[#allocation3] sm:$0x4] %v302
    %305 = vst [vmem:[#allocation3 + $0x8] sm:$0x4] %v303
    %v308 = vrot.slane %v302, 2
    %v309 = vrot.slane %v303, 1
    %v310 = vsel %vm137, %v309, %v308
    %312 = vmatprep.subr.mxu0 0.0
    %313 = vmatpush1.msra.mxu0 %v52
    %314 = vmatprep.subr.mxu0 0.0
    %315 = vmatpush1.msra.mxu0 %v51
    %316 = vmatprep.subr.mxu0 0.0
    %317 = vmatpush1.msra.mxu0 %v50
    %318 = vmatprep.subr.mxu0 0.0
    %319 = vmatpush1.msra.mxu0 %v49
    %320 = vmatprep.subr.mxu0 0.0
    %321 = vmatpush1.msra.mxu0 %v48
    %322 = vmatprep.subr.mxu0 0.0
    %323 = vmatpush1.msra.mxu0 %v47
    %324 = vmatprep.subr.mxu0 0.0
    %325 = vmatpush1.msra.mxu0 %v46
    %326 = vmatprep.subr.mxu0 0.0
    %327 = vmatpush1.msra.mxu0 %v45
    %328 = vmatprep.subr.mxu0 0.0
    %329 = vmatpush1.msra.mxu0 %v44
    %330 = vmatprep.subr.mxu0 0.0
    %331 = vmatpush1.msra.mxu0 %v43
    %332 = vmatprep.subr.mxu0 0.0
    %333 = vmatpush1.msra.mxu0 %v42
    %334 = vmatprep.subr.mxu0 0.0
    %335 = vmatpush1.msra.mxu0 %v41
    %336 = vmatprep.subr.mxu0 0.0
    %337 = vmatpush1.msra.mxu0 %v40
    %338 = vmatprep.subr.mxu0 0.0
    %339 = vmatpush1.msra.mxu0 %v39
    %340 = vmatprep.subr.mxu0 0.0
    %341 = vmatpush1.msra.mxu0 %v38
    %342 = vmatprep.subr.mxu0 0.0
    %343 = vmatpush1.msra.mxu0 %v37
    %344 = vmatprep.subr.mxu0 0.0
    %345 = vmatpush2.msra.mxu0 0.0
    %346 = vmatprep.subr.mxu0 0.0
    %347 = vmatpush2.msra.mxu0 0.0
    %348 = vmatprep.subr.mxu0 0.0
    %349 = vmatpush2.msra.mxu0 0.0
    %350 = vmatprep.subr.mxu0 0.0
    %351 = vmatpush2.msra.mxu0 0.0
    %352 = vmatprep.subr.mxu0 0.0
    %353 = vmatpush2.msra.mxu0 0.0
    %354 = vmatprep.subr.mxu0 0.0
    %355 = vmatpush2.msra.mxu0 0.0
    %356 = vmatprep.subr.mxu0 0.0
    %357 = vmatpush2.msra.mxu0 0.0
    %358 = vmatprep.subr.mxu0 0.0
    %359 = vmatpush2.msra.mxu0 0.0
    %360 = vmatprep.subr.mxu0 0.0
    %361 = vmatpush2.msra.mxu0 0.0
    %362 = vmatprep.subr.mxu0 0.0
    %363 = vmatpush2.msra.mxu0 0.0
    %364 = vmatprep.subr.mxu0 0.0
    %365 = vmatpush2.msra.mxu0 0.0
    %366 = vmatprep.subr.mxu0 0.0
    %367 = vmatpush2.msra.mxu0 0.0
    %368 = vmatprep.subr.mxu0 0.0
    %369 = vmatpush2.msra.mxu0 0.0
    %370 = vmatprep.subr.mxu0 0.0
    %371 = vmatpush2.msra.mxu0 0.0
    %372 = vmatprep.subr.mxu0 0.0
    %373 = vmatpush2.msra.mxu0 0.0
    %374 = vmatprep.subr.mxu0 0.0
    %375 = vmatpush2.msra.mxu0 0.0
    %376 = vmatprep.mubr.f32.mxu0 0.0
    %377 = vmatmul.mubr.f32.gmra.mxu0 %v310
    %v378 = vpop.f32.mrf.mxu0
    %v379 = vadd.f32 0.0, %v378
    %v380 = vpop.f32.mrf.mxu0
    %381 = vdwg.mxu0
    %v383 = vrot.slane %v379, 5
    %v384 = vrot.slane %v379, 6
    %v387 = vadd.f32 %v35, %v383
    %v388 = vadd.f32 %v36, %v384
    %v389 = vtanh.pop %v387
    %v390 = vtanh.pop %v388
    %391 = vst [vmem:[#allocation3] sm:$0x8] %v389
    %392 = vst [vmem:[#allocation3 + $0x8] sm:$0x8] %v390
    %v395 = vrot.slane %v389, 3
    %v396 = vrot.slane %v390, 2
    %v397 = vsel %vm137, %v396, %v395
    %399 = vmatprep.subr.mxu0 0.0
    %400 = vmatpush1.msra.mxu0 %v52
    %401 = vmatprep.subr.mxu0 0.0
    %402 = vmatpush1.msra.mxu0 %v51
    %403 = vmatprep.subr.mxu0 0.0
    %404 = vmatpush1.msra.mxu0 %v50
    %405 = vmatprep.subr.mxu0 0.0
    %406 = vmatpush1.msra.mxu0 %v49
    %407 = vmatprep.subr.mxu0 0.0
    %408 = vmatpush1.msra.mxu0 %v48
    %409 = vmatprep.subr.mxu0 0.0
    %410 = vmatpush1.msra.mxu0 %v47
    %411 = vmatprep.subr.mxu0 0.0
    %412 = vmatpush1.msra.mxu0 %v46
    %413 = vmatprep.subr.mxu0 0.0
    %414 = vmatpush1.msra.mxu0 %v45
    %415 = vmatprep.subr.mxu0 0.0
    %416 = vmatpush1.msra.mxu0 %v44
    %417 = vmatprep.subr.mxu0 0.0
    %418 = vmatpush1.msra.mxu0 %v43
    %419 = vmatprep.subr.mxu0 0.0
    %420 = vmatpush1.msra.mxu0 %v42
    %421 = vmatprep.subr.mxu0 0.0
    %422 = vmatpush1.msra.mxu0 %v41
    %423 = vmatprep.subr.mxu0 0.0
    %424 = vmatpush1.msra.mxu0 %v40
    %425 = vmatprep.subr.mxu0 0.0
    %426 = vmatpush1.msra.mxu0 %v39
    %427 = vmatprep.subr.mxu0 0.0
    %428 = vmatpush1.msra.mxu0 %v38
    %429 = vmatprep.subr.mxu0 0.0
    %430 = vmatpush1.msra.mxu0 %v37
    %431 = vmatprep.subr.mxu0 0.0
    %432 = vmatpush2.msra.mxu0 0.0
    %433 = vmatprep.subr.mxu0 0.0
    %434 = vmatpush2.msra.mxu0 0.0
    %435 = vmatprep.subr.mxu0 0.0
    %436 = vmatpush2.msra.mxu0 0.0
    %437 = vmatprep.subr.mxu0 0.0
    %438 = vmatpush2.msra.mxu0 0.0
    %439 = vmatprep.subr.mxu0 0.0
    %440 = vmatpush2.msra.mxu0 0.0
    %441 = vmatprep.subr.mxu0 0.0
    %442 = vmatpush2.msra.mxu0 0.0
    %443 = vmatprep.subr.mxu0 0.0
    %444 = vmatpush2.msra.mxu0 0.0
    %445 = vmatprep.subr.mxu0 0.0
    %446 = vmatpush2.msra.mxu0 0.0
    %447 = vmatprep.subr.mxu0 0.0
    %448 = vmatpush2.msra.mxu0 0.0
    %449 = vmatprep.subr.mxu0 0.0
    %450 = vmatpush2.msra.mxu0 0.0
    %451 = vmatprep.subr.mxu0 0.0
    %452 = vmatpush2.msra.mxu0 0.0
    %453 = vmatprep.subr.mxu0 0.0
    %454 = vmatpush2.msra.mxu0 0.0
    %455 = vmatprep.subr.mxu0 0.0
    %456 = vmatpush2.msra.mxu0 0.0
    %457 = vmatprep.subr.mxu0 0.0
    %458 = vmatpush2.msra.mxu0 0.0
    %459 = vmatprep.subr.mxu0 0.0
    %460 = vmatpush2.msra.mxu0 0.0
    %461 = vmatprep.subr.mxu0 0.0
    %462 = vmatpush2.msra.mxu0 0.0
    %463 = vmatprep.mubr.f32.mxu0 0.0
    %464 = vmatmul.mubr.f32.gmra.mxu0 %v397
    %v465 = vpop.f32.mrf.mxu0
    %v466 = vadd.f32 0.0, %v465
    %v467 = vpop.f32.mrf.mxu0
    %468 = vdwg.mxu0
    %v470 = vrot.slane %v466, 4
    %v471 = vrot.slane %v466, 5
    %v474 = vadd.f32 %v35, %v470
    %v475 = vadd.f32 %v36, %v471
    %v476 = vtanh.pop %v474
    %v477 = vtanh.pop %v475
    %478 = vst [vmem:[#allocation3] sm:$0x10] %v476
    %479 = vst [vmem:[#allocation3 + $0x8] sm:$0x10] %v477
    %v482 = vrot.slane %v476, 4
    %v483 = vrot.slane %v477, 3
    %v484 = vsel %vm137, %v483, %v482
    %486 = vmatprep.subr.mxu0 0.0
    %487 = vmatpush1.msra.mxu0 %v52
    %488 = vmatprep.subr.mxu0 0.0
    %489 = vmatpush1.msra.mxu0 %v51
    %490 = vmatprep.subr.mxu0 0.0
    %491 = vmatpush1.msra.mxu0 %v50
    %492 = vmatprep.subr.mxu0 0.0
    %493 = vmatpush1.msra.mxu0 %v49
    %494 = vmatprep.subr.mxu0 0.0
    %495 = vmatpush1.msra.mxu0 %v48
    %496 = vmatprep.subr.mxu0 0.0
    %497 = vmatpush1.msra.mxu0 %v47
    %498 = vmatprep.subr.mxu0 0.0
    %499 = vmatpush1.msra.mxu0 %v46
    %500 = vmatprep.subr.mxu0 0.0
    %501 = vmatpush1.msra.mxu0 %v45
    %502 = vmatprep.subr.mxu0 0.0
    %503 = vmatpush1.msra.mxu0 %v44
    %504 = vmatprep.subr.mxu0 0.0
    %505 = vmatpush1.msra.mxu0 %v43
    %506 = vmatprep.subr.mxu0 0.0
    %507 = vmatpush1.msra.mxu0 %v42
    %508 = vmatprep.subr.mxu0 0.0
    %509 = vmatpush1.msra.mxu0 %v41
    %510 = vmatprep.subr.mxu0 0.0
    %511 = vmatpush1.msra.mxu0 %v40
    %512 = vmatprep.subr.mxu0 0.0
    %513 = vmatpush1.msra.mxu0 %v39
    %514 = vmatprep.subr.mxu0 0.0
    %515 = vmatpush1.msra.mxu0 %v38
    %516 = vmatprep.subr.mxu0 0.0
    %517 = vmatpush1.msra.mxu0 %v37
    %518 = vmatprep.subr.mxu0 0.0
    %519 = vmatpush2.msra.mxu0 0.0
    %520 = vmatprep.subr.mxu0 0.0
    %521 = vmatpush2.msra.mxu0 0.0
    %522 = vmatprep.subr.mxu0 0.0
    %523 = vmatpush2.msra.mxu0 0.0
    %524 = vmatprep.subr.mxu0 0.0
    %525 = vmatpush2.msra.mxu0 0.0
    %526 = vmatprep.subr.mxu0 0.0
    %527 = vmatpush2.msra.mxu0 0.0
    %528 = vmatprep.subr.mxu0 0.0
    %529 = vmatpush2.msra.mxu0 0.0
    %530 = vmatprep.subr.mxu0 0.0
    %531 = vmatpush2.msra.mxu0 0.0
    %532 = vmatprep.subr.mxu0 0.0
    %533 = vmatpush2.msra.mxu0 0.0
    %534 = vmatprep.subr.mxu0 0.0
    %535 = vmatpush2.msra.mxu0 0.0
    %536 = vmatprep.subr.mxu0 0.0
    %537 = vmatpush2.msra.mxu0 0.0
    %538 = vmatprep.subr.mxu0 0.0
    %539 = vmatpush2.msra.mxu0 0.0
    %540 = vmatprep.subr.mxu0 0.0
    %541 = vmatpush2.msra.mxu0 0.0
    %542 = vmatprep.subr.mxu0 0.0
    %543 = vmatpush2.msra.mxu0 0.0
    %544 = vmatprep.subr.mxu0 0.0
    %545 = vmatpush2.msra.mxu0 0.0
    %546 = vmatprep.subr.mxu0 0.0
    %547 = vmatpush2.msra.mxu0 0.0
    %548 = vmatprep.subr.mxu0 0.0
    %549 = vmatpush2.msra.mxu0 0.0
    %550 = vmatprep.mubr.f32.mxu0 0.0
    %551 = vmatmul.mubr.f32.gmra.mxu0 %v484
    %v552 = vpop.f32.mrf.mxu0
    %v553 = vadd.f32 0.0, %v552
    %v554 = vpop.f32.mrf.mxu0
    %555 = vdwg.mxu0
    %v557 = vrot.slane %v553, 3
    %v558 = vrot.slane %v553, 4
    %v561 = vadd.f32 %v35, %v557
    %v562 = vadd.f32 %v36, %v558
    %v563 = vtanh.pop %v561
    %v564 = vtanh.pop %v562
    %565 = vst [vmem:[#allocation3] sm:$0x20] %v563
    %566 = vst [vmem:[#allocation3 + $0x8] sm:$0x20] %v564
    %v569 = vrot.slane %v563, 5
    %v570 = vrot.slane %v564, 4
    %v571 = vsel %vm137, %v570, %v569
    %573 = vmatprep.subr.mxu0 0.0
    %574 = vmatpush1.msra.mxu0 %v52
    %575 = vmatprep.subr.mxu0 0.0
    %576 = vmatpush1.msra.mxu0 %v51
    %577 = vmatprep.subr.mxu0 0.0
    %578 = vmatpush1.msra.mxu0 %v50
    %579 = vmatprep.subr.mxu0 0.0
    %580 = vmatpush1.msra.mxu0 %v49
    %581 = vmatprep.subr.mxu0 0.0
    %582 = vmatpush1.msra.mxu0 %v48
    %583 = vmatprep.subr.mxu0 0.0
    %584 = vmatpush1.msra.mxu0 %v47
    %585 = vmatprep.subr.mxu0 0.0
    %586 = vmatpush1.msra.mxu0 %v46
    %587 = vmatprep.subr.mxu0 0.0
    %588 = vmatpush1.msra.mxu0 %v45
    %589 = vmatprep.subr.mxu0 0.0
    %590 = vmatpush1.msra.mxu0 %v44
    %591 = vmatprep.subr.mxu0 0.0
    %592 = vmatpush1.msra.mxu0 %v43
    %593 = vmatprep.subr.mxu0 0.0
    %594 = vmatpush1.msra.mxu0 %v42
    %595 = vmatprep.subr.mxu0 0.0
    %596 = vmatpush1.msra.mxu0 %v41
    %597 = vmatprep.subr.mxu0 0.0
    %598 = vmatpush1.msra.mxu0 %v40
    %599 = vmatprep.subr.mxu0 0.0
    %600 = vmatpush1.msra.mxu0 %v39
    %601 = vmatprep.subr.mxu0 0.0
    %602 = vmatpush1.msra.mxu0 %v38
    %603 = vmatprep.subr.mxu0 0.0
    %604 = vmatpush1.msra.mxu0 %v37
    %605 = vmatprep.subr.mxu0 0.0
    %606 = vmatpush2.msra.mxu0 0.0
    %607 = vmatprep.subr.mxu0 0.0
    %608 = vmatpush2.msra.mxu0 0.0
    %609 = vmatprep.subr.mxu0 0.0
    %610 = vmatpush2.msra.mxu0 0.0
    %611 = vmatprep.subr.mxu0 0.0
    %612 = vmatpush2.msra.mxu0 0.0
    %613 = vmatprep.subr.mxu0 0.0
    %614 = vmatpush2.msra.mxu0 0.0
    %615 = vmatprep.subr.mxu0 0.0
    %616 = vmatpush2.msra.mxu0 0.0
    %617 = vmatprep.subr.mxu0 0.0
    %618 = vmatpush2.msra.mxu0 0.0
    %619 = vmatprep.subr.mxu0 0.0
    %620 = vmatpush2.msra.mxu0 0.0
    %621 = vmatprep.subr.mxu0 0.0
    %622 = vmatpush2.msra.mxu0 0.0
    %623 = vmatprep.subr.mxu0 0.0
    %624 = vmatpush2.msra.mxu0 0.0
    %625 = vmatprep.subr.mxu0 0.0
    %626 = vmatpush2.msra.mxu0 0.0
    %627 = vmatprep.subr.mxu0 0.0
    %628 = vmatpush2.msra.mxu0 0.0
    %629 = vmatprep.subr.mxu0 0.0
    %630 = vmatpush2.msra.mxu0 0.0
    %631 = vmatprep.subr.mxu0 0.0
    %632 = vmatpush2.msra.mxu0 0.0
    %633 = vmatprep.subr.mxu0 0.0
    %634 = vmatpush2.msra.mxu0 0.0
    %635 = vmatprep.subr.mxu0 0.0
    %636 = vmatpush2.msra.mxu0 0.0
    %637 = vmatprep.mubr.f32.mxu0 0.0
    %638 = vmatmul.mubr.f32.gmra.mxu0 %v571
    %v639 = vpop.f32.mrf.mxu0
    %v640 = vadd.f32 0.0, %v639
    %v641 = vpop.f32.mrf.mxu0
    %642 = vdwg.mxu0
    %v644 = vrot.slane %v640, 2
    %v645 = vrot.slane %v640, 3
    %v648 = vadd.f32 %v35, %v644
    %v649 = vadd.f32 %v36, %v645
    %v650 = vtanh.pop %v648
    %v651 = vtanh.pop %v649
    %652 = vst [vmem:[#allocation3] sm:$0x40] %v650
    %653 = vst [vmem:[#allocation3 + $0x8] sm:$0x40] %v651
    %v656 = vrot.slane %v650, 6
    %v657 = vrot.slane %v651, 5
    %v658 = vsel %vm137, %v657, %v656
    %660 = vmatprep.subr.mxu0 0.0
    %661 = vmatpush1.msra.mxu0 %v52
    %662 = vmatprep.subr.mxu0 0.0
    %663 = vmatpush1.msra.mxu0 %v51
    %664 = vmatprep.subr.mxu0 0.0
    %665 = vmatpush1.msra.mxu0 %v50
    %666 = vmatprep.subr.mxu0 0.0
    %667 = vmatpush1.msra.mxu0 %v49
    %668 = vmatprep.subr.mxu0 0.0
    %669 = vmatpush1.msra.mxu0 %v48
    %670 = vmatprep.subr.mxu0 0.0
    %671 = vmatpush1.msra.mxu0 %v47
    %672 = vmatprep.subr.mxu0 0.0
    %673 = vmatpush1.msra.mxu0 %v46
    %674 = vmatprep.subr.mxu0 0.0
    %675 = vmatpush1.msra.mxu0 %v45
    %676 = vmatprep.subr.mxu0 0.0
    %677 = vmatpush1.msra.mxu0 %v44
    %678 = vmatprep.subr.mxu0 0.0
    %679 = vmatpush1.msra.mxu0 %v43
    %680 = vmatprep.subr.mxu0 0.0
    %681 = vmatpush1.msra.mxu0 %v42
    %682 = vmatprep.subr.mxu0 0.0
    %683 = vmatpush1.msra.mxu0 %v41
    %684 = vmatprep.subr.mxu0 0.0
    %685 = vmatpush1.msra.mxu0 %v40
    %686 = vmatprep.subr.mxu0 0.0
    %687 = vmatpush1.msra.mxu0 %v39
    %688 = vmatprep.subr.mxu0 0.0
    %689 = vmatpush1.msra.mxu0 %v38
    %690 = vmatprep.subr.mxu0 0.0
    %691 = vmatpush1.msra.mxu0 %v37
    %692 = vmatprep.subr.mxu0 0.0
    %693 = vmatpush2.msra.mxu0 0.0
    %694 = vmatprep.subr.mxu0 0.0
    %695 = vmatpush2.msra.mxu0 0.0
    %696 = vmatprep.subr.mxu0 0.0
    %697 = vmatpush2.msra.mxu0 0.0
    %698 = vmatprep.subr.mxu0 0.0
    %699 = vmatpush2.msra.mxu0 0.0
    %700 = vmatprep.subr.mxu0 0.0
    %701 = vmatpush2.msra.mxu0 0.0
    %702 = vmatprep.subr.mxu0 0.0
    %703 = vmatpush2.msra.mxu0 0.0
    %704 = vmatprep.subr.mxu0 0.0
    %705 = vmatpush2.msra.mxu0 0.0
    %706 = vmatprep.subr.mxu0 0.0
    %707 = vmatpush2.msra.mxu0 0.0
    %708 = vmatprep.subr.mxu0 0.0
    %709 = vmatpush2.msra.mxu0 0.0
    %710 = vmatprep.subr.mxu0 0.0
    %711 = vmatpush2.msra.mxu0 0.0
    %712 = vmatprep.subr.mxu0 0.0
    %713 = vmatpush2.msra.mxu0 0.0
    %714 = vmatprep.subr.mxu0 0.0
    %715 = vmatpush2.msra.mxu0 0.0
    %716 = vmatprep.subr.mxu0 0.0
    %717 = vmatpush2.msra.mxu0 0.0
    %718 = vmatprep.subr.mxu0 0.0
    %719 = vmatpush2.msra.mxu0 0.0
    %720 = vmatprep.subr.mxu0 0.0
    %721 = vmatpush2.msra.mxu0 0.0
    %722 = vmatprep.subr.mxu0 0.0
    %723 = vmatpush2.msra.mxu0 0.0
    %724 = vmatprep.mubr.f32.mxu0 0.0
    %725 = vmatmul.mubr.f32.gmra.mxu0 %v658
    %v726 = vpop.f32.mrf.mxu0
    %v727 = vadd.f32 0.0, %v726
    %v728 = vpop.f32.mrf.mxu0
    %729 = vdwg.mxu0
    %v731 = vrot.slane %v727, 1
    %v732 = vrot.slane %v727, 2
    %v735 = vadd.f32 %v35, %v731
    %v736 = vadd.f32 %v36, %v732
    %v737 = vtanh.pop %v735
    %v738 = vtanh.pop %v736
    %739 = vst [vmem:[#allocation3] sm:$0x80] %v737
    %740 = vst [vmem:[#allocation3 + $0x8] sm:$0x80] %v738
    %v743 = vrot.slane %v738, 7
    %746 = vst [vmem:[#allocation2 - $0x7] sm:$0x80] %v737
    %747 = vst [vmem:[#allocation2 + $0x1] sm:$0x1] %v743
    %v748 = vld [vmem:[#allocation3] sm:$0xff]
    %v749 = vld [vmem:[#allocation3 + $0x8] sm:$0xff]
    %v750 = vld [vmem:[%s2] sm:$0xff]
    %v751 = vld [vmem:[%s2 + $0x8] sm:$0xff]
    %v752 = vld [vmem:[%s2 + $0x10] sm:$0xff]
    %v753 = vld [vmem:[%s2 + $0x18] sm:$0xff]
    %v754 = vld [vmem:[%s2 + $0x20] sm:$0xff]
    %v755 = vld [vmem:[%s2 + $0x28] sm:$0xff]
    %v756 = vld [vmem:[%s2 + $0x30] sm:$0xff]
    %v757 = vld [vmem:[%s2 + $0x38] sm:$0xff]
    %v758 = vld [vmem:[%s2 + $0x40] sm:$0xff]
    %v759 = vld [vmem:[%s2 + $0x48] sm:$0xff]
    %v760 = vld [vmem:[%s2 + $0x50] sm:$0xff]
    %v761 = vld [vmem:[%s2 + $0x58] sm:$0xff]
    %v762 = vld [vmem:[%s2 + $0x60] sm:$0xff]
    %v763 = vld [vmem:[%s2 + $0x68] sm:$0xff]
    %v764 = vld [vmem:[%s2 + $0x70] sm:$0xff]
    %v765 = vld [vmem:[%s2 + $0x78] sm:$0xff]
    %v766 = vld [vmem:[%s3] sm:$0x1]
    %v768 = vlaneseq
    %v769 = vshrl.u32 %v768, 7
    %v770 = vsub.s32 0, %v769
    %v771 = vrot.slane %v766, %v770
    %773 = vmatprep.subr.mxu0 0.0
    %774 = vmatpush1.msra.mxu0 %v765
    %775 = vmatprep.subr.mxu0 0.0
    %776 = vmatpush1.msra.mxu0 %v764
    %777 = vmatprep.subr.mxu0 0.0
    %778 = vmatpush1.msra.mxu0 %v763
    %779 = vmatprep.subr.mxu0 0.0
    %780 = vmatpush1.msra.mxu0 %v762
    %781 = vmatprep.subr.mxu0 0.0
    %782 = vmatpush1.msra.mxu0 %v761
    %783 = vmatprep.subr.mxu0 0.0
    %784 = vmatpush1.msra.mxu0 %v760
    %785 = vmatprep.subr.mxu0 0.0
    %786 = vmatpush1.msra.mxu0 %v759
    %787 = vmatprep.subr.mxu0 0.0
    %788 = vmatpush1.msra.mxu0 %v758
    %789 = vmatprep.subr.mxu0 0.0
    %790 = vmatpush1.msra.mxu0 %v757
    %791 = vmatprep.subr.mxu0 0.0
    %792 = vmatpush1.msra.mxu0 %v756
    %793 = vmatprep.subr.mxu0 0.0
    %794 = vmatpush1.msra.mxu0 %v755
    %795 = vmatprep.subr.mxu0 0.0
    %796 = vmatpush1.msra.mxu0 %v754
    %797 = vmatprep.subr.mxu0 0.0
    %798 = vmatpush1.msra.mxu0 %v753
    %799 = vmatprep.subr.mxu0 0.0
    %800 = vmatpush1.msra.mxu0 %v752
    %801 = vmatprep.subr.mxu0 0.0
    %802 = vmatpush1.msra.mxu0 %v751
    %803 = vmatprep.subr.mxu0 0.0
    %804 = vmatpush1.msra.mxu0 %v750
    %805 = vmatprep.subr.mxu0 0.0
    %806 = vmatpush2.msra.mxu0 0.0
    %807 = vmatprep.subr.mxu0 0.0
    %808 = vmatpush2.msra.mxu0 0.0
    %809 = vmatprep.subr.mxu0 0.0
    %810 = vmatpush2.msra.mxu0 0.0
    %811 = vmatprep.subr.mxu0 0.0
    %812 = vmatpush2.msra.mxu0 0.0
    %813 = vmatprep.subr.mxu0 0.0
    %814 = vmatpush2.msra.mxu0 0.0
    %815 = vmatprep.subr.mxu0 0.0
    %816 = vmatpush2.msra.mxu0 0.0
    %817 = vmatprep.subr.mxu0 0.0
    %818 = vmatpush2.msra.mxu0 0.0
    %819 = vmatprep.subr.mxu0 0.0
    %820 = vmatpush2.msra.mxu0 0.0
    %821 = vmatprep.subr.mxu0 0.0
    %822 = vmatpush2.msra.mxu0 0.0
    %823 = vmatprep.subr.mxu0 0.0
    %824 = vmatpush2.msra.mxu0 0.0
    %825 = vmatprep.subr.mxu0 0.0
    %826 = vmatpush2.msra.mxu0 0.0
    %827 = vmatprep.subr.mxu0 0.0
    %828 = vmatpush2.msra.mxu0 0.0
    %829 = vmatprep.subr.mxu0 0.0
    %830 = vmatpush2.msra.mxu0 0.0
    %831 = vmatprep.subr.mxu0 0.0
    %832 = vmatpush2.msra.mxu0 0.0
    %833 = vmatprep.subr.mxu0 0.0
    %834 = vmatpush2.msra.mxu0 0.0
    %835 = vmatprep.subr.mxu0 0.0
    %836 = vmatpush2.msra.mxu0 0.0
    %837 = vmatprep.mubr.f32.mxu0 0.0
    %838 = vmatmul.mubr.f32.gmra.mxu0 %v748
    %v839 = vpop.f32.mrf.mxu0
    %v840 = vadd.f32 %v771, %v839
    %v841 = vpop.f32.mrf.mxu0
    %842 = vmatprep.mubr.f32.mxu0 0.0
    %843 = vmatmul.mubr.f32.gmra.mxu0 %v749
    %v844 = vpop.f32.mrf.mxu0
    %v845 = vadd.f32 %v771, %v844
    %v846 = vpop.f32.mrf.mxu0
    %847 = vdwg.mxu0
    %v848 = vld [vmem:[%s4] sm:$0xff]
    %v849 = vld [vmem:[%s4 + $0x8] sm:$0xff]
    %v850 = vld [vmem:[%s4 + $0x10] sm:$0xff]
    %v851 = vld [vmem:[%s4 + $0x18] sm:$0xff]
    %v852 = vld [vmem:[%s4 + $0x20] sm:$0xff]
    %v853 = vld [vmem:[%s4 + $0x28] sm:$0xff]
    %v854 = vld [vmem:[%s4 + $0x30] sm:$0xff]
    %v855 = vld [vmem:[%s4 + $0x38] sm:$0xff]
    %v856 = vld [vmem:[%s4 + $0x40] sm:$0xff]
    %v857 = vld [vmem:[%s4 + $0x48] sm:$0xff]
    %v858 = vld [vmem:[%s4 + $0x50] sm:$0xff]
    %v859 = vld [vmem:[%s4 + $0x58] sm:$0xff]
    %v860 = vld [vmem:[%s4 + $0x60] sm:$0xff]
    %v861 = vld [vmem:[%s4 + $0x68] sm:$0xff]
    %v862 = vld [vmem:[%s4 + $0x70] sm:$0xff]
    %v863 = vld [vmem:[%s4 + $0x78] sm:$0xff]
    %v864 = vld [vmem:[%s5] sm:$0x1]
    %v866 = vlaneseq
    %v867 = vshrl.u32 %v866, 7
    %v868 = vsub.s32 0, %v867
    %v869 = vrot.slane %v864, %v868
    %871 = vmatprep.subr.mxu0 0.0
    %872 = vmatpush1.msra.mxu0 %v863
    %873 = vmatprep.subr.mxu0 0.0
    %874 = vmatpush1.msra.mxu0 %v862
    %875 = vmatprep.subr.mxu0 0.0
    %876 = vmatpush1.msra.mxu0 %v861
    %877 = vmatprep.subr.mxu0 0.0
    %878 = vmatpush1.msra.mxu0 %v860
    %879 = vmatprep.subr.mxu0 0.0
    %880 = vmatpush1.msra.mxu0 %v859
    %881 = vmatprep.subr.mxu0 0.0
    %882 = vmatpush1.msra.mxu0 %v858
    %883 = vmatprep.subr.mxu0 0.0
    %884 = vmatpush1.msra.mxu0 %v857
    %885 = vmatprep.subr.mxu0 0.0
    %886 = vmatpush1.msra.mxu0 %v856
    %887 = vmatprep.subr.mxu0 0.0
    %888 = vmatpush1.msra.mxu0 %v855
    %889 = vmatprep.subr.mxu0 0.0
    %890 = vmatpush1.msra.mxu0 %v854
    %891 = vmatprep.subr.mxu0 0.0
    %892 = vmatpush1.msra.mxu0 %v853
    %893 = vmatprep.subr.mxu0 0.0
    %894 = vmatpush1.msra.mxu0 %v852
    %895 = vmatprep.subr.mxu0 0.0
    %896 = vmatpush1.msra.mxu0 %v851
    %897 = vmatprep.subr.mxu0 0.0
    %898 = vmatpush1.msra.mxu0 %v850
    %899 = vmatprep.subr.mxu0 0.0
    %900 = vmatpush1.msra.mxu0 %v849
    %901 = vmatprep.subr.mxu0 0.0
    %902 = vmatpush1.msra.mxu0 %v848
    %903 = vmatprep.subr.mxu0 0.0
    %904 = vmatpush2.msra.mxu0 0.0
    %905 = vmatprep.subr.mxu0 0.0
    %906 = vmatpush2.msra.mxu0 0.0
    %907 = vmatprep.subr.mxu0 0.0
    %908 = vmatpush2.msra.mxu0 0.0
    %909 = vmatprep.subr.mxu0 0.0
    %910 = vmatpush2.msra.mxu0 0.0
    %911 = vmatprep.subr.mxu0 0.0
    %912 = vmatpush2.msra.mxu0 0.0
    %913 = vmatprep.subr.mxu0 0.0
    %914 = vmatpush2.msra.mxu0 0.0
    %915 = vmatprep.subr.mxu0 0.0
    %916 = vmatpush2.msra.mxu0 0.0
    %917 = vmatprep.subr.mxu0 0.0
    %918 = vmatpush2.msra.mxu0 0.0
    %919 = vmatprep.subr.mxu0 0.0
    %920 = vmatpush2.msra.mxu0 0.0
    %921 = vmatprep.subr.mxu0 0.0
    %922 = vmatpush2.msra.mxu0 0.0
    %923 = vmatprep.subr.mxu0 0.0
    %924 = vmatpush2.msra.mxu0 0.0
    %925 = vmatprep.subr.mxu0 0.0
    %926 = vmatpush2.msra.mxu0 0.0
    %927 = vmatprep.subr.mxu0 0.0
    %928 = vmatpush2.msra.mxu0 0.0
    %929 = vmatprep.subr.mxu0 0.0
    %930 = vmatpush2.msra.mxu0 0.0
    %931 = vmatprep.subr.mxu0 0.0
    %932 = vmatpush2.msra.mxu0 0.0
    %933 = vmatprep.subr.mxu0 0.0
    %934 = vmatpush2.msra.mxu0 0.0
    %935 = vmatprep.mubr.f32.mxu0 0.0
    %936 = vmatmul.mubr.f32.gmra.mxu0 %v840
    %v937 = vpop.f32.mrf.mxu0
    %v938 = vadd.f32 %v869, %v937
    %v939 = vpop.f32.mrf.mxu0
    %940 = vmatprep.mubr.f32.mxu0 0.0
    %941 = vmatmul.mubr.f32.gmra.mxu0 %v845
    %v942 = vpop.f32.mrf.mxu0
    %v943 = vadd.f32 %v869, %v942
    %v944 = vpop.f32.mrf.mxu0
    %945 = vdwg.mxu0
    %v946 = vld [vmem:[%s6] sm:$0xff]
    %v947 = vld [vmem:[%s6 + $0x8] sm:$0xff]
    %v948 = vld [vmem:[%s6 + $0x10] sm:$0xff]
    %v949 = vld [vmem:[%s6 + $0x18] sm:$0xff]
    %v950 = vld [vmem:[%s6 + $0x20] sm:$0xff]
    %v951 = vld [vmem:[%s6 + $0x28] sm:$0xff]
    %v952 = vld [vmem:[%s6 + $0x30] sm:$0xff]
    %v953 = vld [vmem:[%s6 + $0x38] sm:$0xff]
    %v954 = vld [vmem:[%s6 + $0x40] sm:$0xff]
    %v955 = vld [vmem:[%s6 + $0x48] sm:$0xff]
    %v956 = vld [vmem:[%s6 + $0x50] sm:$0xff]
    %v957 = vld [vmem:[%s6 + $0x58] sm:$0xff]
    %v958 = vld [vmem:[%s6 + $0x60] sm:$0xff]
    %v959 = vld [vmem:[%s6 + $0x68] sm:$0xff]
    %v960 = vld [vmem:[%s6 + $0x70] sm:$0xff]
    %v961 = vld [vmem:[%s6 + $0x78] sm:$0xff]
    %v962 = vld [vmem:[%s7] sm:$0x1]
    %v964 = vlaneseq
    %v965 = vshrl.u32 %v964, 7
    %v966 = vsub.s32 0, %v965
    %v967 = vrot.slane %v962, %v966
    %969 = vmatprep.subr.mxu0 0.0
    %970 = vmatpush1.msra.mxu0 %v961
    %971 = vmatprep.subr.mxu0 0.0
    %972 = vmatpush1.msra.mxu0 %v960
    %973 = vmatprep.subr.mxu0 0.0
    %974 = vmatpush1.msra.mxu0 %v959
    %975 = vmatprep.subr.mxu0 0.0
    %976 = vmatpush1.msra.mxu0 %v958
    %977 = vmatprep.subr.mxu0 0.0
    %978 = vmatpush1.msra.mxu0 %v957
    %979 = vmatprep.subr.mxu0 0.0
    %980 = vmatpush1.msra.mxu0 %v956
    %981 = vmatprep.subr.mxu0 0.0
    %982 = vmatpush1.msra.mxu0 %v955
    %983 = vmatprep.subr.mxu0 0.0
    %984 = vmatpush1.msra.mxu0 %v954
    %985 = vmatprep.subr.mxu0 0.0
    %986 = vmatpush1.msra.mxu0 %v953
    %987 = vmatprep.subr.mxu0 0.0
    %988 = vmatpush1.msra.mxu0 %v952
    %989 = vmatprep.subr.mxu0 0.0
    %990 = vmatpush1.msra.mxu0 %v951
    %991 = vmatprep.subr.mxu0 0.0
    %992 = vmatpush1.msra.mxu0 %v950
    %993 = vmatprep.subr.mxu0 0.0
    %994 = vmatpush1.msra.mxu0 %v949
    %995 = vmatprep.subr.mxu0 0.0
    %996 = vmatpush1.msra.mxu0 %v948
    %997 = vmatprep.subr.mxu0 0.0
    %998 = vmatpush1.msra.mxu0 %v947
    %999 = vmatprep.subr.mxu0 0.0
    %1000 = vmatpush1.msra.mxu0 %v946
    %1001 = vmatprep.subr.mxu0 0.0
    %1002 = vmatpush2.msra.mxu0 0.0
    %1003 = vmatprep.subr.mxu0 0.0
    %1004 = vmatpush2.msra.mxu0 0.0
    %1005 = vmatprep.subr.mxu0 0.0
    %1006 = vmatpush2.msra.mxu0 0.0
    %1007 = vmatprep.subr.mxu0 0.0
    %1008 = vmatpush2.msra.mxu0 0.0
    %1009 = vmatprep.subr.mxu0 0.0
    %1010 = vmatpush2.msra.mxu0 0.0
    %1011 = vmatprep.subr.mxu0 0.0
    %1012 = vmatpush2.msra.mxu0 0.0
    %1013 = vmatprep.subr.mxu0 0.0
    %1014 = vmatpush2.msra.mxu0 0.0
    %1015 = vmatprep.subr.mxu0 0.0
    %1016 = vmatpush2.msra.mxu0 0.0
    %1017 = vmatprep.subr.mxu0 0.0
    %1018 = vmatpush2.msra.mxu0 0.0
    %1019 = vmatprep.subr.mxu0 0.0
    %1020 = vmatpush2.msra.mxu0 0.0
    %1021 = vmatprep.subr.mxu0 0.0
    %1022 = vmatpush2.msra.mxu0 0.0
    %1023 = vmatprep.subr.mxu0 0.0
    %1024 = vmatpush2.msra.mxu0 0.0
    %1025 = vmatprep.subr.mxu0 0.0
    %1026 = vmatpush2.msra.mxu0 0.0
    %1027 = vmatprep.subr.mxu0 0.0
    %1028 = vmatpush2.msra.mxu0 0.0
    %1029 = vmatprep.subr.mxu0 0.0
    %1030 = vmatpush2.msra.mxu0 0.0
    %1031 = vmatprep.subr.mxu0 0.0
    %1032 = vmatpush2.msra.mxu0 0.0
    %1033 = vmatprep.mubr.f32.mxu0 0.0
    %1034 = vmatmul.mubr.f32.gmra.mxu0 %v938
    %v1035 = vpop.f32.mrf.mxu0
    %v1036 = vadd.f32 %v967, %v1035
    %v1037 = vpop.f32.mrf.mxu0
    %1038 = vmatprep.mubr.f32.mxu0 0.0
    %1039 = vmatmul.mubr.f32.gmra.mxu0 %v943
    %v1040 = vpop.f32.mrf.mxu0
    %v1041 = vadd.f32 %v967, %v1040
    %v1042 = vpop.f32.mrf.mxu0
    %1043 = vdwg.mxu0
    %1044 = vst [vmem:[#allocation4] sm:$0xff] %v1036
    %1045 = vst [vmem:[#allocation4 + $0x8] sm:$0xff] %v1041
    // Predicated region
    $region38: #{rnn_model_forward.3} parent=1 // pred_check
      _
    $region39: #{rnn_model_forward.3} parent=1 // pred_check_branch
      %1047 = sbr.rel (0) target = $region41
    $region40: #{rnn_model_forward.3} parent=1 // pred_region
      %s1049 = ssub.s32 256, 256
      %1050 = vsyncadd [#allocation5], %s1049
      %s1051 = sshll.u32 [#allocation4], 4
      %s1052 = int_to_ptr.vmem [resolvable:$true] %s1051
      %1057 = dma.vmem_to_hbm [thread:$0]  %s1052, 256, %s8, [#allocation5], 128, 128, 8
    $region41: #{rnn_model_forward.3} parent=1 // pred_fallthru
      _
    // Predicated region
    $region42: #{rnn_model_forward.3} parent=1 // pred_check
      _
    $region43: #{rnn_model_forward.3} parent=1 // pred_check_branch
      %1059 = sbr.rel (0) target = $region45
    $region44: #{rnn_model_forward.3} parent=1 // pred_region
      %1060 = dma.done [#allocation5], 256
    $region45: #{rnn_model_forward.3} parent=1 // pred_fallthru
      _
    %1061 = vsyncpa [#allocation5], 1

</llo_original>
